<compile_context>
chip_gen: v7x
topology: tpu7x:2x2x1
jax: 0.10.0
libtpu: 0.0.40
codegen_flags: <defaults>
</compile_context>

<pallas_src>
import math

import jax
import jax.numpy as jnp
from jax.experimental import pallas as pl
from jax.experimental.pallas import tpu as pltpu


# ----------------------------------------------------------------------------
# Pallas kernels
# ----------------------------------------------------------------------------
def _proj_kernel(x_ref, w_ref, o_ref):
    """Fused q/k/v 1x1-conv projection: (tm, Cin) @ (Cin, 3*Cin) -> bf16 tile."""
    o_ref[...] = jnp.dot(
        x_ref[...], w_ref[...], preferred_element_type=jnp.float32
    ).astype(o_ref.dtype)


def _attn_kernel(q_ref, k_ref, v_ref, o_ref, m_sc, l_sc, acc_sc):
    """Flash-style attention: online softmax over the kv grid axis.

    q_ref/k_ref/v_ref blocks: (1, tq|tk, D) bf16. Scale is pre-folded into q.
    """
    kv = pl.program_id(2)

    @pl.when(kv == 0)
    def _():
        m_sc[...] = jnp.full(m_sc.shape, -jnp.inf, m_sc.dtype)
        l_sc[...] = jnp.zeros(l_sc.shape, l_sc.dtype)
        acc_sc[...] = jnp.zeros(acc_sc.shape, acc_sc.dtype)

    q = q_ref[0]                                   # (tq, D) bf16
    k = k_ref[0]                                   # (tk, D) bf16
    # scores = q @ k^T  (contract on D; no explicit transpose materialized)
    s = jax.lax.dot_general(
        q, k, (((1,), (1,)), ((), ())), preferred_element_type=jnp.float32
    )                                              # (tq, tk) f32

    m_prev = m_sc[...]                             # (tq, 1)
    m_new = jnp.maximum(m_prev, s.max(axis=-1, keepdims=True))
    alpha = jnp.exp(m_prev - m_new)
    p = jnp.exp(s - m_new)                         # (tq, tk) f32
    l_sc[...] = alpha * l_sc[...] + p.sum(axis=-1, keepdims=True)
    acc_sc[...] = alpha * acc_sc[...] + jnp.dot(
        p.astype(v_ref.dtype), v_ref[0], preferred_element_type=jnp.float32
    )
    m_sc[...] = m_new

    @pl.when(kv == pl.num_programs(2) - 1)
    def _():
        o_ref[0] = (
            acc_sc[...] * pl.reciprocal(l_sc[...], approx=True)
        ).astype(o_ref.dtype)


# ----------------------------------------------------------------------------
# Wrapper (glue: layout permutes/reshapes only)
# ----------------------------------------------------------------------------
def _pick_tile(size, cap):
    """Largest divisor of `size` that is <= cap and a multiple of 8 (or == size)."""
    cap = max(1, min(cap, size))
    for cand in range(cap, 0, -1):
        if size % cand == 0 and (cand % 8 == 0 or cand == size):
            return cand
    return size


def sbsa_forward(params, x, *, tm=256, tq=128, tk=128):
    """x: (N, C, F, T) float32 — same calling convention as the torch module."""
    n, c, f, t = x.shape
    d = f * c
    scale = 1.0 / math.sqrt(d)

    # Fold the softmax 1/sqrt(F*C) scale into Wq (exact: conv has no bias).
    w_cat = jnp.concatenate(
        [params["wq"] * scale, params["wk"], params["wv"]], axis=1
    ).astype(jnp.bfloat16)                                   # (C, 3C)

    # (N, C, F, T) -> (N, T, F, C) -> (N*T*F, C); the 1x1 conv mixes channels only.
    x_rows = jnp.transpose(x, (0, 3, 2, 1)).reshape(n * t * f, c).astype(jnp.bfloat16)
    m = n * t * f
    tmm = _pick_tile(m, tm)

    proj = pl.pallas_call(
        _proj_kernel,
        out_shape=jax.ShapeDtypeStruct((m, 3 * c), jnp.bfloat16),
        grid=(m // tmm,),
        in_specs=[
            pl.BlockSpec((tmm, c), lambda i: (i, 0)),
            pl.BlockSpec((c, 3 * c), lambda i: (0, 0)),
        ],
        out_specs=pl.BlockSpec((tmm, 3 * c), lambda i: (i, 0)),
        compiler_params=pltpu.CompilerParams(dimension_semantics=("parallel",)),
    )(x_rows, w_cat)

    # Split q/k/v and flatten (F, C) -> D = F*C (matches torch's view order).
    proj = proj.reshape(n, t, f, 3 * c)
    q = proj[..., 0 * c:1 * c].reshape(n, t, d)
    k = proj[..., 1 * c:2 * c].reshape(n, t, d)
    v = proj[..., 2 * c:3 * c].reshape(n, t, d)

    tqq = _pick_tile(t, tq)
    tkk = _pick_tile(t, tk)

    out = pl.pallas_call(
        _attn_kernel,
        out_shape=jax.ShapeDtypeStruct((n, t, d), jnp.float32),
        grid_spec=pltpu.PrefetchScalarGridSpec(
            num_scalar_prefetch=0,
            grid=(n, t // tqq, t // tkk),
            in_specs=[
                pl.BlockSpec((1, tqq, d), lambda b, qi, ki: (b, qi, 0)),
                pl.BlockSpec((1, tkk, d), lambda b, qi, ki: (b, ki, 0)),
                pl.BlockSpec((1, tkk, d), lambda b, qi, ki: (b, ki, 0)),
            ],
            out_specs=pl.BlockSpec((1, tqq, d), lambda b, qi, ki: (b, qi, 0)),
            scratch_shapes=[
                pltpu.VMEM((tqq, 1), jnp.float32),   # running max
                pltpu.VMEM((tqq, 1), jnp.float32),   # running denom
                pltpu.VMEM((tqq, d), jnp.float32),   # output accumulator
            ],
        ),
        compiler_params=pltpu.CompilerParams(
            dimension_semantics=("parallel", "parallel", "arbitrary")
        ),
    )(q, k, v)

    # (N, T, D) -> (N, T, F, C) -> (N, C, F, T)  (matches torch's final permute).
    return jnp.transpose(out.reshape(n, t, f, c), (0, 3, 2, 1))


# ----------------------------------------------------------------------------
# Deterministic synthetic parameters (no checkpoints)
# ----------------------------------------------------------------------------
def build_sbsa_params(key, in_planes):
    """Weights stored as (Cin, Cout) = transpose of torch Conv2d 1x1 weights."""
    bound = 1.0 / math.sqrt(in_planes)
    ks = jax.random.split(key, 3)

    def mk(k):
        return jax.random.uniform(k, (in_planes, in_planes), jnp.float32, -bound, bound)

    return {"wq": mk(ks[0]), "wk": mk(ks[1]), "wv": mk(ks[2])}


# ----------------------------------------------------------------------------
if __name__ == "__main__":
    key = jax.random.PRNGKey(0)
    pkey, xkey = jax.random.split(key)

    # Small but tiling-exercising config: N=2 batches, C=32 planes, F=8 freq bins,
    # T=128 frames.  D = F*C = 256 (lane-dense);  attention grid = (2, 2, 2).
    N, C, F, T = 2, 32, 8, 128
    params = build_sbsa_params(pkey, in_planes=C)
    x = jax.random.normal(xkey, (N, C, F, T), jnp.float32)

    fwd = jax.jit(lambda p, xx: sbsa_forward(p, xx, tm=256, tq=64, tk=64))
    out = fwd(params, x)
    jax.block_until_ready(out)

    assert out.shape == (N, C, F, T)
    assert bool(jnp.all(jnp.isfinite(out)))
    print("KERNEL_OK")
</pallas_src>

<mosaic_0001>
module attributes {stable_mosaic.version = 11 : i64} {
  func.func @_proj_kernel(%arg0: i32, %arg1: memref<256x32xbf16, #tpu.memory_space<vmem>>, %arg2: memref<32x96xbf16, #tpu.memory_space<vmem>>, %arg3: memref<256x96xbf16, #tpu.memory_space<vmem>>) attributes {dimension_semantics = [#tpu.dimension_semantics<parallel>], iteration_bounds = array<i64: 8>, scalar_prefetch = 0 : i64, scratch_operands = 0 : i64, tpu.core_type = #tpu.core_type<tc>, window_params = [{transform_indices = @transform_0, window_bounds = array<i64: 256, 32>}, {pipeline_mode = #tpu.pipeline_mode<synchronous>, transform_indices = @transform_1, window_bounds = array<i64: 32, 96>}, {transform_indices = @transform_2, window_bounds = array<i64: 256, 96>}]} {
    %c0 = arith.constant 0 : index
    %c0_0 = arith.constant 0 : index
    %0 = vector.load %arg1[%c0, %c0_0] : memref<256x32xbf16, #tpu.memory_space<vmem>>, vector<256x32xbf16>
    %c0_1 = arith.constant 0 : index
    %c0_2 = arith.constant 0 : index
    %1 = vector.load %arg2[%c0_1, %c0_2] : memref<32x96xbf16, #tpu.memory_space<vmem>>, vector<32x96xbf16>
    %cst = arith.constant dense<0.000000e+00> : vector<256x96xf32>
    %2 = tpu.matmul %0, %1, %cst {dimension_numbers = #tpu.dot_dimension_numbers<[1], [0], [0], [1], [0, 0, 1, 1], [], []>} : vector<256x32xbf16>, vector<32x96xbf16>, vector<256x96xf32> -> vector<256x96xf32>
    %3 = arith.truncf %2 : vector<256x96xf32> to vector<256x96xbf16>
    %c0_3 = arith.constant 0 : index
    %c0_4 = arith.constant 0 : index
    %4 = vector.load %arg3[%c0_3, %c0_4] : memref<256x96xbf16, #tpu.memory_space<vmem>>, vector<256x96xbf16>
    tpu.vector_store %arg3[%c0_3, %c0_4], %3 {strides = array<i32>} : memref<256x96xbf16, #tpu.memory_space<vmem>>, vector<256x96xbf16>,
    return
  }
  func.func @transform_0(%arg0: i32) -> (i32, i32) {
    %c0_i32 = arith.constant 0 : i32
    %c0_i32_0 = arith.constant 0 : i32
    return %arg0, %c0_i32 : i32, i32
  }
  func.func @transform_1(%arg0: i32) -> (i32, i32) {
    %c0_i32 = arith.constant 0 : i32
    %c0_i32_0 = arith.constant 0 : i32
    %c0_i32_1 = arith.constant 0 : i32
    return %c0_i32, %c0_i32_0 : i32, i32
  }
  func.func @transform_2(%arg0: i32) -> (i32, i32) {
    %c0_i32 = arith.constant 0 : i32
    %c0_i32_0 = arith.constant 0 : i32
    return %arg0, %c0_i32 : i32, i32
  }
}

module attributes {stable_mosaic.version = 11 : i64} {
  func.func @_attn_kernel(%arg0: i32, %arg1: i32, %arg2: i32, %arg3: memref<1x64x256xbf16, #tpu.memory_space<vmem>>, %arg4: memref<1x64x256xbf16, #tpu.memory_space<vmem>>, %arg5: memref<1x64x256xbf16, #tpu.memory_space<vmem>>, %arg6: memref<1x64x256xf32, #tpu.memory_space<vmem>>, %arg7: memref<64x1xf32, #tpu.memory_space<vmem>>, %arg8: memref<64x1xf32, #tpu.memory_space<vmem>>, %arg9: memref<64x256xf32, #tpu.memory_space<vmem>>) attributes {dimension_semantics = [#tpu.dimension_semantics<parallel>, #tpu.dimension_semantics<parallel>, #tpu.dimension_semantics<arbitrary>], iteration_bounds = array<i64: 2, 2, 2>, scalar_prefetch = 0 : i64, scratch_operands = 3 : i64, tpu.core_type = #tpu.core_type<tc>, window_params = [{transform_indices = @transform_0, window_bounds = array<i64: 1, 64, 256>}, {transform_indices = @transform_1, window_bounds = array<i64: 1, 64, 256>}, {transform_indices = @transform_2, window_bounds = array<i64: 1, 64, 256>}, {transform_indices = @transform_3, window_bounds = array<i64: 1, 64, 256>}]} {
    %c0_i32 = arith.constant 0 : i32
    %0 = arith.cmpi eq, %arg2, %c0_i32 : i32
    %1 = arith.extui %0 : i1 to i32
    %c0_i32_0 = arith.constant 0 : i32
    %2 = arith.cmpi ne, %1, %c0_i32_0 : i32
    scf.if %2 {
      %cst_25 = arith.constant 0xFF800000 : f32
      %36 = vector.broadcast %cst_25 : f32 to vector<64x1xf32>
      %c0_26 = arith.constant 0 : index
      %c0_27 = arith.constant 0 : index
      %37 = vector.load %arg7[%c0_26, %c0_27] : memref<64x1xf32, #tpu.memory_space<vmem>>, vector<64x1xf32>
      tpu.vector_store %arg7[%c0_26, %c0_27], %36 {strides = array<i32>} : memref<64x1xf32, #tpu.memory_space<vmem>>, vector<64x1xf32>,
      %cst_28 = arith.constant 0.000000e+00 : f32
      %38 = vector.broadcast %cst_28 : f32 to vector<64x1xf32>
      %c0_29 = arith.constant 0 : index
      %c0_30 = arith.constant 0 : index
      %39 = vector.load %arg8[%c0_29, %c0_30] : memref<64x1xf32, #tpu.memory_space<vmem>>, vector<64x1xf32>
      tpu.vector_store %arg8[%c0_29, %c0_30], %38 {strides = array<i32>} : memref<64x1xf32, #tpu.memory_space<vmem>>, vector<64x1xf32>,
      %cst_31 = arith.constant 0.000000e+00 : f32
      %40 = vector.broadcast %cst_31 : f32 to vector<64x256xf32>
      %c0_32 = arith.constant 0 : index
      %c0_33 = arith.constant 0 : index
      %41 = vector.load %arg9[%c0_32, %c0_33] : memref<64x256xf32, #tpu.memory_space<vmem>>, vector<64x256xf32>
      tpu.vector_store %arg9[%c0_32, %c0_33], %40 {strides = array<i32>} : memref<64x256xf32, #tpu.memory_space<vmem>>, vector<64x256xf32>,
    } else {
    }
    %c0 = arith.constant 0 : index
    %c0_1 = arith.constant 0 : index
    %c0_2 = arith.constant 0 : index
    %3 = vector.load %arg3[%c0, %c0_1, %c0_2] : memref<1x64x256xbf16, #tpu.memory_space<vmem>>, vector<1x64x256xbf16>
    %4 = vector.shape_cast %3 : vector<1x64x256xbf16> to vector<64x256xbf16>
    %c0_3 = arith.constant 0 : index
    %c0_4 = arith.constant 0 : index
    %c0_5 = arith.constant 0 : index
    %5 = vector.load %arg4[%c0_3, %c0_4, %c0_5] : memref<1x64x256xbf16, #tpu.memory_space<vmem>>, vector<1x64x256xbf16>
    %6 = vector.shape_cast %5 : vector<1x64x256xbf16> to vector<64x256xbf16>
    %cst = arith.constant dense<0.000000e+00> : vector<64x64xf32>
    %7 = tpu.matmul %4, %6, %cst {dimension_numbers = #tpu.dot_dimension_numbers<[1], [1], [0], [0], [0, 0, 1, 0], [], []>} : vector<64x256xbf16>, vector<64x256xbf16>, vector<64x64xf32> -> vector<64x64xf32>
    %c0_6 = arith.constant 0 : index
    %c0_7 = arith.constant 0 : index
    %8 = vector.load %arg7[%c0_6, %c0_7] : memref<64x1xf32, #tpu.memory_space<vmem>>, vector<64x1xf32>
    %cst_8 = arith.constant dense<0xFF800000> : vector<64xf32>
    %9 = vector.multi_reduction <maximumf>, %7, %cst_8 [1] : vector<64x64xf32> to vector<64xf32>
    %10 = vector.shape_cast %9 : vector<64xf32> to vector<64x1xf32>
    %11 = arith.maximumf %8, %10 : vector<64x1xf32>
    %12 = arith.subf %8, %11 : vector<64x1xf32>
    %13 = math.exp %12 : vector<64x1xf32>
    %14 = vector.broadcast %11 : vector<64x1xf32> to vector<64x64xf32>
    %15 = arith.subf %7, %14 : vector<64x64xf32>
    %16 = math.exp %15 : vector<64x64xf32>
    %c0_9 = arith.constant 0 : index
    %c0_10 = arith.constant 0 : index
    %17 = vector.load %arg8[%c0_9, %c0_10] : memref<64x1xf32, #tpu.memory_space<vmem>>, vector<64x1xf32>
    %18 = arith.mulf %13, %17 : vector<64x1xf32>
    %cst_11 = arith.constant dense<0.000000e+00> : vector<64xf32>
    %19 = vector.multi_reduction <add>, %16, %cst_11 [1] : vector<64x64xf32> to vector<64xf32>
    %20 = vector.shape_cast %19 : vector<64xf32> to vector<64x1xf32>
    %21 = arith.addf %18, %20 : vector<64x1xf32>
    %c0_12 = arith.constant 0 : index
    %c0_13 = arith.constant 0 : index
    %22 = vector.load %arg8[%c0_12, %c0_13] : memref<64x1xf32, #tpu.memory_space<vmem>>, vector<64x1xf32>
    tpu.vector_store %arg8[%c0_12, %c0_13], %21 {strides = array<i32>} : memref<64x1xf32, #tpu.memory_space<vmem>>, vector<64x1xf32>,
    %c0_14 = arith.constant 0 : index
    %c0_15 = arith.constant 0 : index
    %23 = vector.load %arg9[%c0_14, %c0_15] : memref<64x256xf32, #tpu.memory_space<vmem>>, vector<64x256xf32>
    %24 = vector.broadcast %13 : vector<64x1xf32> to vector<64x256xf32>
    %25 = arith.mulf %24, %23 : vector<64x256xf32>
    %26 = arith.truncf %16 : vector<64x64xf32> to vector<64x64xbf16>
    %c0_16 = arith.constant 0 : index
    %c0_17 = arith.constant 0 : index
    %c0_18 = arith.constant 0 : index
    %27 = vector.load %arg5[%c0_16, %c0_17, %c0_18] : memref<1x64x256xbf16, #tpu.memory_space<vmem>>, vector<1x64x256xbf16>
    %28 = vector.shape_cast %27 : vector<1x64x256xbf16> to vector<64x256xbf16>
    %cst_19 = arith.constant dense<0.000000e+00> : vector<64x256xf32>
    %29 = tpu.matmul %26, %28, %cst_19 {dimension_numbers = #tpu.dot_dimension_numbers<[1], [0], [0], [1], [0, 0, 1, 1], [], []>} : vector<64x64xbf16>, vector<64x256xbf16>, vector<64x256xf32> -> vector<64x256xf32>
    %30 = arith.addf %25, %29 : vector<64x256xf32>
    %c0_20 = arith.constant 0 : index
    %c0_21 = arith.constant 0 : index
    %31 = vector.load %arg9[%c0_20, %c0_21] : memref<64x256xf32, #tpu.memory_space<vmem>>, vector<64x256xf32>
    tpu.vector_store %arg9[%c0_20, %c0_21], %30 {strides = array<i32>} : memref<64x256xf32, #tpu.memory_space<vmem>>, vector<64x256xf32>,
    %c0_22 = arith.constant 0 : index
    %c0_23 = arith.constant 0 : index
    %32 = vector.load %arg7[%c0_22, %c0_23] : memref<64x1xf32, #tpu.memory_space<vmem>>, vector<64x1xf32>
    tpu.vector_store %arg7[%c0_22, %c0_23], %11 {strides = array<i32>} : memref<64x1xf32, #tpu.memory_space<vmem>>, vector<64x1xf32>,
    %c1_i32 = arith.constant 1 : i32
    %33 = arith.cmpi eq, %arg2, %c1_i32 : i32
    %34 = arith.extui %33 : i1 to i32
    %c0_i32_24 = arith.constant 0 : i32
    %35 = arith.cmpi ne, %34, %c0_i32_24 : i32
    scf.if %35 {
      %c0_25 = arith.constant 0 : index
      %c0_26 = arith.constant 0 : index
      %36 = vector.load %arg9[%c0_25, %c0_26] : memref<64x256xf32, #tpu.memory_space<vmem>>, vector<64x256xf32>
      %c0_27 = arith.constant 0 : index
      %c0_28 = arith.constant 0 : index
      %37 = vector.load %arg8[%c0_27, %c0_28] : memref<64x1xf32, #tpu.memory_space<vmem>>, vector<64x1xf32>
      %38 = tpu.reciprocal %37 {approx = true} : vector<64x1xf32> -> vector<64x1xf32>
      %39 = vector.broadcast %38 : vector<64x1xf32> to vector<64x256xf32>
      %40 = arith.mulf %36, %39 : vector<64x256xf32>
      %c0_29 = arith.constant 0 : index
      %c0_30 = arith.constant 0 : index
      %c0_31 = arith.constant 0 : index
      %41 = vector.load %arg6[%c0_29, %c0_30, %c0_31] : memref<1x64x256xf32, #tpu.memory_space<vmem>>, vector<1x64x256xf32>
      %42 = vector.shape_cast %41 : vector<1x64x256xf32> to vector<64x256xf32>
      %43 = vector.shape_cast %40 : vector<64x256xf32> to vector<1x64x256xf32>
      tpu.vector_store %arg6[%c0_29, %c0_30, %c0_31], %43 {strides = array<i32>} : memref<1x64x256xf32, #tpu.memory_space<vmem>>, vector<1x64x256xf32>,
    } else {
    }
    return
  }
  func.func @transform_0(%arg0: i32, %arg1: i32, %arg2: i32) -> (i32, i32, i32) {
    %c0_i32 = arith.constant 0 : i32
    %c0_i32_0 = arith.constant 0 : i32
    return %arg0, %arg1, %c0_i32 : i32, i32, i32
  }
  func.func @transform_1(%arg0: i32, %arg1: i32, %arg2: i32) -> (i32, i32, i32) {
    %c0_i32 = arith.constant 0 : i32
    %c0_i32_0 = arith.constant 0 : i32
    return %arg0, %arg2, %c0_i32 : i32, i32, i32
  }
  func.func @transform_2(%arg0: i32, %arg1: i32, %arg2: i32) -> (i32, i32, i32) {
    %c0_i32 = arith.constant 0 : i32
    %c0_i32_0 = arith.constant 0 : i32
    return %arg0, %arg2, %c0_i32 : i32, i32, i32
  }
  func.func @transform_3(%arg0: i32, %arg1: i32, %arg2: i32) -> (i32, i32, i32) {
    %c0_i32 = arith.constant 0 : i32
    %c0_i32_0 = arith.constant 0 : i32
    return %arg0, %arg1, %c0_i32 : i32, i32, i32
  }
}

</mosaic_0001>

<llo_original>
// kernel: _lambda_.2
$region0: #{_lambda_.2}
  #allocation0 [shape = 'u32[]', space=smem, size = 0x4, offset = 0x4, fixed_abs, tag = 'smem constant byte address 0x4 - core index']
  #allocation1 [shape = 'u32[144,128]{1,0:T(1,128)}', space=vmem, size = 0x12000, scoped, tag = 'internal scratch']
  %s0 = inlined_call_operand.vmem [shape: bf16[2048,32], index: 0, kind: input, shape index: {}]
  %s1 = inlined_call_operand.vmem [shape: bf16[32,96], index: 1, kind: input, shape index: {}]
  %s2 = inlined_call_operand.vmem [shape: bf16[2048,96], index: 2, kind: output, shape index: {}]
  %s3 = sld [smem:[#allocation0]]
  $region41: #{_lambda_.2} parent=0
    _
  %s5 = ssub.s32 1, %s3
  %s6 = scalar_select 0, %s5, %s3
  loop: start=0, step=1, limit=10
  $region2: #{_lambda_.2} parent=0 // loop_pre_header
    _
  $region3: #{_lambda_.2} parent=0 // loop_header
    %s8 = sphi 0, %s12
    %p9 = scmp.ge.s32.totalorder %s8, 10
    %s18 = sphi 0, %s20
    %s21 = sphi 0, %s18
    %s22 = sphi 0, %s21
    %s38 = sphi 0, %s22
    %s42 = sphi 0, %s42
    %s44 = sphi 0, %s42
    %s45 = sphi 0, %s44
    %s59 = sphi 0, %s45
    %s65 = sphi 0, %s67
    %s68 = sphi 0, %s65
    %s69 = sphi 0, %s68
    %s85 = sphi 0, %s69
  $region4: #{_lambda_.2} parent=0 // loop_header_branch
    %11 = sbr.rel (%p9) target = $region8
  $region5: #{_lambda_.2} parent=0 // loop_body
    %s13 = ssub.s32 %s8, 1
    %s14 = ssub.s32 %s8, 2
    %s15 = sadd.s32 %s8, 1
    %s16 = ssub.s32 %s8, %s15
    %p17 = scmp.eq.s32.totalorder %s16, 0
    %s19 = sadd.s32 %s18, 1
    %s20 = scalar_select %p17, %s18, %s19
    %p23 = pneg %p17
    %p24 = scmp.eq.s32.totalorder %s8, 7
    %p25 = por %p23, %p24
    %p26 = scmp.ne.s32.totalorder %s18, %s21
    %p27 = scmp.eq.s32.totalorder %s8, 0
    %p28 = por %p26, %p27
    %p29 = scmp.ne.s32.totalorder %s18, %s21
    %p30 = scmp.eq.s32.totalorder %s13, 7
    %p31 = por %p29, %p30
    %p32 = scmp.ne.s32.totalorder %s21, %s22
    %p33 = scmp.eq.s32.totalorder %s13, 0
    %p34 = por %p32, %p33
    %p35 = scmp.ne.s32.totalorder %s21, %s22
    %p36 = scmp.eq.s32.totalorder %s14, 7
    %p37 = por %p35, %p36
    %p39 = scmp.ne.s32.totalorder %s22, %s38
    %p40 = scmp.eq.s32.totalorder %s14, 0
    %p41 = por %p39, %p40
    %s43 = sadd.s32 %s42, 1
    %p46 = scmp.eq.s32.totalorder %s8, 7
    %p47 = scmp.ne.s32.totalorder %s42, %s44
    %p48 = scmp.eq.s32.totalorder %s8, 0
    %p49 = por %p47, %p48
    %p50 = scmp.ne.s32.totalorder %s42, %s44
    %p51 = scmp.eq.s32.totalorder %s13, 7
    %p52 = por %p50, %p51
    %p53 = scmp.ne.s32.totalorder %s44, %s45
    %p54 = scmp.eq.s32.totalorder %s13, 0
    %p55 = por %p53, %p54
    %p56 = scmp.ne.s32.totalorder %s44, %s45
    %p57 = scmp.eq.s32.totalorder %s14, 7
    %p58 = por %p56, %p57
    %p60 = scmp.ne.s32.totalorder %s45, %s59
    %p61 = scmp.eq.s32.totalorder %s14, 0
    %p62 = por %p60, %p61
    %s63 = ssub.s32 %s8, %s15
    %p64 = scmp.eq.s32.totalorder %s63, 0
    %s66 = sadd.s32 %s65, 1
    %s67 = scalar_select %p64, %s65, %s66
    %p70 = pneg %p64
    %p71 = scmp.eq.s32.totalorder %s8, 7
    %p72 = por %p70, %p71
    %p73 = scmp.ne.s32.totalorder %s65, %s68
    %p74 = scmp.eq.s32.totalorder %s8, 0
    %p75 = por %p73, %p74
    %p76 = scmp.ne.s32.totalorder %s65, %s68
    %p77 = scmp.eq.s32.totalorder %s13, 7
    %p78 = por %p76, %p77
    %p79 = scmp.ne.s32.totalorder %s68, %s69
    %p80 = scmp.eq.s32.totalorder %s13, 0
    %p81 = por %p79, %p80
    %p82 = scmp.ne.s32.totalorder %s68, %s69
    %p83 = scmp.eq.s32.totalorder %s14, 7
    %p84 = por %p82, %p83
    %p86 = scmp.ne.s32.totalorder %s69, %s85
    %p87 = scmp.eq.s32.totalorder %s14, 0
    %p88 = por %p86, %p87
    %p89 = scmp.le.s32.totalorder 1, %s8
    %p90 = scmp.lt.s32.totalorder %s8, 9
    %p91 = pnand %p89, %p90
    %p92 = pneg %p91
    // Predicated region
    $region9: #{_lambda_.2} parent=5 // pred_check
      _
    $region10: #{_lambda_.2} parent=5 // pred_check_branch
      %94 = sbr.rel (%p91) target = $region12
    $region11: #{_lambda_.2} parent=5 // pred_region
      %s95 = ssub.s32 %s8, 1
      // Predicated region
      $region13: #{_lambda_.2} parent=11 // pred_check
        %p96 = pneg %p55
      $region14: #{_lambda_.2} parent=11 // pred_check_branch
        %98 = sbr.rel (%p96) target = $region16
      $region15: #{_lambda_.2} parent=11 // pred_region
        _
      $region16: #{_lambda_.2} parent=11 // pred_fallthru
        _
    $region12: #{_lambda_.2} parent=5 // pred_fallthru
      _
    %p99 = scmp.lt.s32.totalorder %s8, 8
    // Predicated region
    $region17: #{_lambda_.2} parent=5 // pred_check
      %p100 = pneg %p99
    $region18: #{_lambda_.2} parent=5 // pred_check_branch
      %102 = sbr.rel (%p100) target = $region20
    $region19: #{_lambda_.2} parent=5 // pred_region
      // Predicated region
      $region21: #{_lambda_.2} parent=19 // pred_check
        %p103 = pneg %p28
      $region22: #{_lambda_.2} parent=19 // pred_check_branch
        %105 = sbr.rel (%p103) target = $region24
      $region23: #{_lambda_.2} parent=19 // pred_region
        %s106 = smul.u32 32, %s8
        %p107 = scmp.lt.s32.totalorder %s106, 255
        %s108 = scalar_select %p107, %s106, 255
        %s109 = smul.addr %s108, 4
        %s110 = scalar_lea.vmem %s0, %s109
        %s111 = smul.u32 32, %s8
      $region24: #{_lambda_.2} parent=19 // pred_fallthru
        _
    $region20: #{_lambda_.2} parent=5 // pred_fallthru
      _
    %p112 = scmp.le.s32.totalorder 1, %s8
    %p113 = scmp.lt.s32.totalorder %s8, 9
    %p114 = pnand %p112, %p113
    %p115 = pneg %p114
    // Predicated region
    $region25: #{_lambda_.2} parent=5 // pred_check
      _
    $region26: #{_lambda_.2} parent=5 // pred_check_branch
      %117 = sbr.rel (%p114) target = $region28
    $region27: #{_lambda_.2} parent=5 // pred_region
      %s118 = ssub.s32 %s8, 1
      %s119 = smul.u32 32, %s13
      %p120 = scmp.lt.s32.totalorder %s119, 255
      %s121 = scalar_select %p120, %s119, 255
      %s122 = smul.addr %s121, 4
      %s123 = scalar_lea.vmem %s0, %s122
      %p124 = pneg %p34
      %p125 = pneg %p31
      %p126 = pneg %p55
      %p127 = pneg %p52
      %p128 = pneg %p81
      %p129 = pneg %p78
      %s130 = smul.u32 32, %s13
      %p131 = scmp.lt.s32.totalorder %s130, 255
      %s132 = scalar_select %p131, %s130, 255
      %s133 = smul.addr %s132, 4
      %s134 = scalar_lea.vmem %s2, %s133
      %s135 = smul.u32 32, %s13
      %p136 = scmp.lt.s32.totalorder %s135, 255
      %s137 = scalar_select %p136, %s135, 255
      %s138 = smul.addr %s137, 4
      %s139 = scalar_lea.vmem %s0, %s138
      %s140 = smul.u32 32, %s13
      %s141 = smul.u32 32, %s13
      %p142 = scmp.lt.s32.totalorder %s141, 255
      %s143 = scalar_select %p142, %s141, 255
      %s144 = smul.addr %s143, 4
      %s145 = scalar_lea.vmem %s2, %s144
      %s146 = smul.u32 32, %s13
      %v148 = vld [vmem:[%s139] sm:$0xf]
      %v149 = vld [vmem:[%s139 + $0x4] sm:$0xf]
      %v150 = vld [vmem:[%s139 + $0x8] sm:$0xf]
      %v151 = vld [vmem:[%s139 + $0xc] sm:$0xf]
      %v152 = vld [vmem:[%s139 + $0x10] sm:$0xf]
      %v153 = vld [vmem:[%s139 + $0x14] sm:$0xf]
      %v154 = vld [vmem:[%s139 + $0x18] sm:$0xf]
      %v155 = vld [vmem:[%s139 + $0x1c] sm:$0xf]
      %v156 = vld [vmem:[%s139 + $0x20] sm:$0xf]
      %v157 = vld [vmem:[%s139 + $0x24] sm:$0xf]
      %v158 = vld [vmem:[%s139 + $0x28] sm:$0xf]
      %v159 = vld [vmem:[%s139 + $0x2c] sm:$0xf]
      %v160 = vld [vmem:[%s139 + $0x30] sm:$0xf]
      %v161 = vld [vmem:[%s139 + $0x34] sm:$0xf]
      %v162 = vld [vmem:[%s139 + $0x38] sm:$0xf]
      %v163 = vld [vmem:[%s139 + $0x3c] sm:$0xf]
      %v164 = vld [vmem:[%s139 + $0x40] sm:$0xf]
      %v165 = vld [vmem:[%s139 + $0x44] sm:$0xf]
      %v166 = vld [vmem:[%s139 + $0x48] sm:$0xf]
      %v167 = vld [vmem:[%s139 + $0x4c] sm:$0xf]
      %v168 = vld [vmem:[%s139 + $0x50] sm:$0xf]
      %v169 = vld [vmem:[%s139 + $0x54] sm:$0xf]
      %v170 = vld [vmem:[%s139 + $0x58] sm:$0xf]
      %v171 = vld [vmem:[%s139 + $0x5c] sm:$0xf]
      %v172 = vld [vmem:[%s139 + $0x60] sm:$0xf]
      %v173 = vld [vmem:[%s139 + $0x64] sm:$0xf]
      %v174 = vld [vmem:[%s139 + $0x68] sm:$0xf]
      %v175 = vld [vmem:[%s139 + $0x6c] sm:$0xf]
      %v176 = vld [vmem:[%s139 + $0x70] sm:$0xf]
      %v177 = vld [vmem:[%s139 + $0x74] sm:$0xf]
      %v178 = vld [vmem:[%s139 + $0x78] sm:$0xf]
      %v179 = vld [vmem:[%s139 + $0x7c] sm:$0xf]
      %v180 = vld [vmem:[%s1] sm:$0xf]
      %v181 = vld [vmem:[%s1 + $0x4] sm:$0xf]
      %v182 = vld [vmem:[%s1 + $0x8] sm:$0xf]
      %v183 = vld [vmem:[%s1 + $0xc] sm:$0xf]
      %v216 = vunpack.c.l.b16 %v148
      %v217 = vunpack.c.l.b16 %v149
      %v218 = vunpack.c.l.b16 %v150
      %v219 = vunpack.c.l.b16 %v151
      %v220 = vunpack.c.l.b16 %v152
      %v221 = vunpack.c.l.b16 %v153
      %v222 = vunpack.c.l.b16 %v154
      %v223 = vunpack.c.l.b16 %v155
      %v224 = vunpack.c.l.b16 %v156
      %v225 = vunpack.c.l.b16 %v157
      %v226 = vunpack.c.l.b16 %v158
      %v227 = vunpack.c.l.b16 %v159
      %v228 = vunpack.c.l.b16 %v160
      %v229 = vunpack.c.l.b16 %v161
      %v230 = vunpack.c.l.b16 %v162
      %v231 = vunpack.c.l.b16 %v163
      %v232 = vunpack.c.l.b16 %v164
      %v233 = vunpack.c.l.b16 %v165
      %v234 = vunpack.c.l.b16 %v166
      %v235 = vunpack.c.l.b16 %v167
      %v236 = vunpack.c.l.b16 %v168
      %v237 = vunpack.c.l.b16 %v169
      %v238 = vunpack.c.l.b16 %v170
      %v239 = vunpack.c.l.b16 %v171
      %v240 = vunpack.c.l.b16 %v172
      %v241 = vunpack.c.l.b16 %v173
      %v242 = vunpack.c.l.b16 %v174
      %v243 = vunpack.c.l.b16 %v175
      %v244 = vunpack.c.l.b16 %v176
      %v245 = vunpack.c.l.b16 %v177
      %v246 = vunpack.c.l.b16 %v178
      %v247 = vunpack.c.l.b16 %v179
      %v248 = vpack.c.b16 %v217, %v216
      %v249 = vpack.c.b16 %v219, %v218
      %v250 = vpack.c.b16 %v221, %v220
      %v251 = vpack.c.b16 %v223, %v222
      %v252 = vpack.c.b16 %v225, %v224
      %v253 = vpack.c.b16 %v227, %v226
      %v254 = vpack.c.b16 %v229, %v228
      %v255 = vpack.c.b16 %v231, %v230
      %v256 = vpack.c.b16 %v233, %v232
      %v257 = vpack.c.b16 %v235, %v234
      %v258 = vpack.c.b16 %v237, %v236
      %v259 = vpack.c.b16 %v239, %v238
      %v260 = vpack.c.b16 %v241, %v240
      %v261 = vpack.c.b16 %v243, %v242
      %v262 = vpack.c.b16 %v245, %v244
      %v263 = vpack.c.b16 %v247, %v246
      %v268 = vunpack.c.l.b16 %v180
      %v269 = vunpack.c.l.b16 %v181
      %v270 = vunpack.c.l.b16 %v182
      %v271 = vunpack.c.l.b16 %v183
      %v272 = vpack.c.b16 %v269, %v268
      %v273 = vpack.c.b16 %v271, %v270
      %vm276 = vcmask 261120
      %v278 = vsel %vm276, %v248, 0
      %v281 = vsel %vm276, %v249, 0
      %v284 = vsel %vm276, %v250, 0
      %v287 = vsel %vm276, %v251, 0
      %v290 = vsel %vm276, %v252, 0
      %v293 = vsel %vm276, %v253, 0
      %v296 = vsel %vm276, %v254, 0
      %v299 = vsel %vm276, %v255, 0
      %v302 = vsel %vm276, %v256, 0
      %v305 = vsel %vm276, %v257, 0
      %v308 = vsel %vm276, %v258, 0
      %v311 = vsel %vm276, %v259, 0
      %v314 = vsel %vm276, %v260, 0
      %v317 = vsel %vm276, %v261, 0
      %v320 = vsel %vm276, %v262, 0
      %v323 = vsel %vm276, %v263, 0
      %325 = vmatprep.subr.bf16.mxu0 0
      %326 = vmatpush1.bf16.msra.mxu0 %v272
      %327 = vmatprep.subr.bf16.mxu0 0
      %328 = vmatpush1.bf16.msra.mxu0 %v273
      %329 = vmatprep.subr.bf16.mxu0 0
      %330 = vmatpush1.bf16.msra.mxu0 0
      %331 = vmatprep.subr.bf16.mxu0 0
      %332 = vmatpush1.bf16.msra.mxu0 0
      %333 = vmatprep.subr.bf16.mxu0 0
      %334 = vmatpush1.bf16.msra.mxu0 0
      %335 = vmatprep.subr.bf16.mxu0 0
      %336 = vmatpush1.bf16.msra.mxu0 0
      %337 = vmatprep.subr.bf16.mxu0 0
      %338 = vmatpush1.bf16.msra.mxu0 0
      %339 = vmatprep.subr.bf16.mxu0 0
      %340 = vmatpush1.bf16.msra.mxu0 0
      %341 = vmatprep.subr.bf16.mxu0 0
      %342 = vmatpush1.bf16.msra.mxu0 0
      %343 = vmatprep.subr.bf16.mxu0 0
      %344 = vmatpush1.bf16.msra.mxu0 0
      %345 = vmatprep.subr.bf16.mxu0 0
      %346 = vmatpush1.bf16.msra.mxu0 0
      %347 = vmatprep.subr.bf16.mxu0 0
      %348 = vmatpush1.bf16.msra.mxu0 0
      %349 = vmatprep.subr.bf16.mxu0 0
      %350 = vmatpush1.bf16.msra.mxu0 0
      %351 = vmatprep.subr.bf16.mxu0 0
      %352 = vmatpush1.bf16.msra.mxu0 0
      %353 = vmatprep.subr.bf16.mxu0 0
      %354 = vmatpush1.bf16.msra.mxu0 0
      %355 = vmatprep.subr.bf16.mxu0 0
      %356 = vmatpush1.bf16.msra.mxu0 0
      %357 = vmatprep.mubr.bf16.mxu0 0
      %358 = vmatmul.mubr.bf16.gmra.mrb[0].mxu0 %v278
      %v359 = vpop.f32.mrb[0].mxu0
      %v360 = vadd.f32 0.0, %v359
      %v361 = vpop.f32.mrb[0].mxu0
      %v362 = vpop.f32.mrb[0].mxu0
      %v363 = vadd.f32 0.0, %v362
      %v364 = vpop.f32.mrb[0].mxu0
      %365 = vmatprep.mubr.bf16.mxu0 0
      %366 = vmatmul.mubr.bf16.gmra.mrb[0].mxu0 %v281
      %v367 = vpop.f32.mrb[0].mxu0
      %v368 = vadd.f32 0.0, %v367
      %v369 = vpop.f32.mrb[0].mxu0
      %v370 = vpop.f32.mrb[0].mxu0
      %v371 = vadd.f32 0.0, %v370
      %v372 = vpop.f32.mrb[0].mxu0
      %373 = vmatprep.mubr.bf16.mxu0 0
      %374 = vmatmul.mubr.bf16.gmra.mrb[0].mxu0 %v284
      %v375 = vpop.f32.mrb[0].mxu0
      %v376 = vadd.f32 0.0, %v375
      %v377 = vpop.f32.mrb[0].mxu0
      %v378 = vpop.f32.mrb[0].mxu0
      %v379 = vadd.f32 0.0, %v378
      %v380 = vpop.f32.mrb[0].mxu0
      %381 = vmatprep.mubr.bf16.mxu0 0
      %382 = vmatmul.mubr.bf16.gmra.mrb[0].mxu0 %v287
      %v383 = vpop.f32.mrb[0].mxu0
      %v384 = vadd.f32 0.0, %v383
      %v385 = vpop.f32.mrb[0].mxu0
      %v386 = vpop.f32.mrb[0].mxu0
      %v387 = vadd.f32 0.0, %v386
      %v388 = vpop.f32.mrb[0].mxu0
      %389 = vmatprep.mubr.bf16.mxu0 0
      %390 = vmatmul.mubr.bf16.gmra.mrb[0].mxu0 %v290
      %v391 = vpop.f32.mrb[0].mxu0
      %v392 = vadd.f32 0.0, %v391
      %v393 = vpop.f32.mrb[0].mxu0
      %v394 = vpop.f32.mrb[0].mxu0
      %v395 = vadd.f32 0.0, %v394
      %v396 = vpop.f32.mrb[0].mxu0
      %397 = vmatprep.mubr.bf16.mxu0 0
      %398 = vmatmul.mubr.bf16.gmra.mrb[0].mxu0 %v293
      %v399 = vpop.f32.mrb[0].mxu0
      %v400 = vadd.f32 0.0, %v399
      %v401 = vpop.f32.mrb[0].mxu0
      %v402 = vpop.f32.mrb[0].mxu0
      %v403 = vadd.f32 0.0, %v402
      %v404 = vpop.f32.mrb[0].mxu0
      %405 = vmatprep.mubr.bf16.mxu0 0
      %406 = vmatmul.mubr.bf16.gmra.mrb[0].mxu0 %v296
      %v407 = vpop.f32.mrb[0].mxu0
      %v408 = vadd.f32 0.0, %v407
      %v409 = vpop.f32.mrb[0].mxu0
      %v410 = vpop.f32.mrb[0].mxu0
      %v411 = vadd.f32 0.0, %v410
      %v412 = vpop.f32.mrb[0].mxu0
      %413 = vmatprep.mubr.bf16.mxu0 0
      %414 = vmatmul.mubr.bf16.gmra.mrb[0].mxu0 %v299
      %v415 = vpop.f32.mrb[0].mxu0
      %v416 = vadd.f32 0.0, %v415
      %v417 = vpop.f32.mrb[0].mxu0
      %v418 = vpop.f32.mrb[0].mxu0
      %v419 = vadd.f32 0.0, %v418
      %v420 = vpop.f32.mrb[0].mxu0
      %421 = vmatprep.mubr.bf16.mxu0 0
      %422 = vmatmul.mubr.bf16.gmra.mrb[0].mxu0 %v302
      %v423 = vpop.f32.mrb[0].mxu0
      %v424 = vadd.f32 0.0, %v423
      %v425 = vpop.f32.mrb[0].mxu0
      %v426 = vpop.f32.mrb[0].mxu0
      %v427 = vadd.f32 0.0, %v426
      %v428 = vpop.f32.mrb[0].mxu0
      %429 = vmatprep.mubr.bf16.mxu0 0
      %430 = vmatmul.mubr.bf16.gmra.mrb[0].mxu0 %v305
      %v431 = vpop.f32.mrb[0].mxu0
      %v432 = vadd.f32 0.0, %v431
      %v433 = vpop.f32.mrb[0].mxu0
      %v434 = vpop.f32.mrb[0].mxu0
      %v435 = vadd.f32 0.0, %v434
      %v436 = vpop.f32.mrb[0].mxu0
      %437 = vmatprep.mubr.bf16.mxu0 0
      %438 = vmatmul.mubr.bf16.gmra.mrb[0].mxu0 %v308
      %v439 = vpop.f32.mrb[0].mxu0
      %v440 = vadd.f32 0.0, %v439
      %v441 = vpop.f32.mrb[0].mxu0
      %v442 = vpop.f32.mrb[0].mxu0
      %v443 = vadd.f32 0.0, %v442
      %v444 = vpop.f32.mrb[0].mxu0
      %445 = vmatprep.mubr.bf16.mxu0 0
      %446 = vmatmul.mubr.bf16.gmra.mrb[0].mxu0 %v311
      %v447 = vpop.f32.mrb[0].mxu0
      %v448 = vadd.f32 0.0, %v447
      %v449 = vpop.f32.mrb[0].mxu0
      %v450 = vpop.f32.mrb[0].mxu0
      %v451 = vadd.f32 0.0, %v450
      %v452 = vpop.f32.mrb[0].mxu0
      %453 = vmatprep.mubr.bf16.mxu0 0
      %454 = vmatmul.mubr.bf16.gmra.mrb[0].mxu0 %v314
      %v455 = vpop.f32.mrb[0].mxu0
      %v456 = vadd.f32 0.0, %v455
      %v457 = vpop.f32.mrb[0].mxu0
      %v458 = vpop.f32.mrb[0].mxu0
      %v459 = vadd.f32 0.0, %v458
      %v460 = vpop.f32.mrb[0].mxu0
      %461 = vmatprep.mubr.bf16.mxu0 0
      %462 = vmatmul.mubr.bf16.gmra.mrb[0].mxu0 %v317
      %v463 = vpop.f32.mrb[0].mxu0
      %v464 = vadd.f32 0.0, %v463
      %v465 = vpop.f32.mrb[0].mxu0
      %v466 = vpop.f32.mrb[0].mxu0
      %v467 = vadd.f32 0.0, %v466
      %v468 = vpop.f32.mrb[0].mxu0
      %469 = vmatprep.mubr.bf16.mxu0 0
      %470 = vmatmul.mubr.bf16.gmra.mrb[0].mxu0 %v320
      %v471 = vpop.f32.mrb[0].mxu0
      %v472 = vadd.f32 0.0, %v471
      %v473 = vpop.f32.mrb[0].mxu0
      %v474 = vpop.f32.mrb[0].mxu0
      %v475 = vadd.f32 0.0, %v474
      %v476 = vpop.f32.mrb[0].mxu0
      %477 = vmatprep.mubr.bf16.mxu0 0
      %478 = vmatmul.mubr.bf16.gmra.mrb[0].mxu0 %v323
      %v479 = vpop.f32.mrb[0].mxu0
      %v480 = vadd.f32 0.0, %v479
      %v481 = vpop.f32.mrb[0].mxu0
      %v482 = vpop.f32.mrb[0].mxu0
      %v483 = vadd.f32 0.0, %v482
      %v484 = vpop.f32.mrb[0].mxu0
      %485 = vdwg.mxu0
      %v486 = vpack.c.bf16 %v363, %v360
      %v487 = vpack.c.bf16 %v371, %v368
      %v488 = vpack.c.bf16 %v379, %v376
      %v489 = vpack.c.bf16 %v387, %v384
      %v490 = vpack.c.bf16 %v395, %v392
      %v491 = vpack.c.bf16 %v403, %v400
      %v492 = vpack.c.bf16 %v411, %v408
      %v493 = vpack.c.bf16 %v419, %v416
      %v494 = vpack.c.bf16 %v427, %v424
      %v495 = vpack.c.bf16 %v435, %v432
      %v496 = vpack.c.bf16 %v443, %v440
      %v497 = vpack.c.bf16 %v451, %v448
      %v498 = vpack.c.bf16 %v459, %v456
      %v499 = vpack.c.bf16 %v467, %v464
      %v500 = vpack.c.bf16 %v475, %v472
      %v501 = vpack.c.bf16 %v483, %v480
      %v518 = vunpack.c.l.b16 %v486
      %v519 = vunpack.c.h.b16 %v486
      %v520 = vunpack.c.l.b16 %v487
      %v521 = vunpack.c.h.b16 %v487
      %v522 = vunpack.c.l.b16 %v488
      %v523 = vunpack.c.h.b16 %v488
      %v524 = vunpack.c.l.b16 %v489
      %v525 = vunpack.c.h.b16 %v489
      %v526 = vunpack.c.l.b16 %v490
      %v527 = vunpack.c.h.b16 %v490
      %v528 = vunpack.c.l.b16 %v491
      %v529 = vunpack.c.h.b16 %v491
      %v530 = vunpack.c.l.b16 %v492
      %v531 = vunpack.c.h.b16 %v492
      %v532 = vunpack.c.l.b16 %v493
      %v533 = vunpack.c.h.b16 %v493
      %v534 = vunpack.c.l.b16 %v494
      %v535 = vunpack.c.h.b16 %v494
      %v536 = vunpack.c.l.b16 %v495
      %v537 = vunpack.c.h.b16 %v495
      %v538 = vunpack.c.l.b16 %v496
      %v539 = vunpack.c.h.b16 %v496
      %v540 = vunpack.c.l.b16 %v497
      %v541 = vunpack.c.h.b16 %v497
      %v542 = vunpack.c.l.b16 %v498
      %v543 = vunpack.c.h.b16 %v498
      %v544 = vunpack.c.l.b16 %v499
      %v545 = vunpack.c.h.b16 %v499
      %v546 = vunpack.c.l.b16 %v500
      %v547 = vunpack.c.h.b16 %v500
      %v548 = vunpack.c.l.b16 %v501
      %v549 = vunpack.c.h.b16 %v501
      %v550 = vpack.c.b16 %v518, %v518
      %v551 = vpack.c.b16 %v519, %v519
      %v552 = vpack.c.b16 %v520, %v520
      %v553 = vpack.c.b16 %v521, %v521
      %v554 = vpack.c.b16 %v522, %v522
      %v555 = vpack.c.b16 %v523, %v523
      %v556 = vpack.c.b16 %v524, %v524
      %v557 = vpack.c.b16 %v525, %v525
      %v558 = vpack.c.b16 %v526, %v526
      %v559 = vpack.c.b16 %v527, %v527
      %v560 = vpack.c.b16 %v528, %v528
      %v561 = vpack.c.b16 %v529, %v529
      %v562 = vpack.c.b16 %v530, %v530
      %v563 = vpack.c.b16 %v531, %v531
      %v564 = vpack.c.b16 %v532, %v532
      %v565 = vpack.c.b16 %v533, %v533
      %v566 = vpack.c.b16 %v534, %v534
      %v567 = vpack.c.b16 %v535, %v535
      %v568 = vpack.c.b16 %v536, %v536
      %v569 = vpack.c.b16 %v537, %v537
      %v570 = vpack.c.b16 %v538, %v538
      %v571 = vpack.c.b16 %v539, %v539
      %v572 = vpack.c.b16 %v540, %v540
      %v573 = vpack.c.b16 %v541, %v541
      %v574 = vpack.c.b16 %v542, %v542
      %v575 = vpack.c.b16 %v543, %v543
      %v576 = vpack.c.b16 %v544, %v544
      %v577 = vpack.c.b16 %v545, %v545
      %v578 = vpack.c.b16 %v546, %v546
      %v579 = vpack.c.b16 %v547, %v547
      %v580 = vpack.c.b16 %v548, %v548
      %v581 = vpack.c.b16 %v549, %v549
      %vm614 = vcmask 781312
      %615 = vst.msk [vmem:[%s145] sm:$0xf] %vm614, %v550
      %616 = vst.msk [vmem:[%s145 + $0x4] sm:$0xf] %vm614, %v551
      %617 = vst.msk [vmem:[%s145 + $0x8] sm:$0xf] %vm614, %v552
      %618 = vst.msk [vmem:[%s145 + $0xc] sm:$0xf] %vm614, %v553
      %619 = vst.msk [vmem:[%s145 + $0x10] sm:$0xf] %vm614, %v554
      %620 = vst.msk [vmem:[%s145 + $0x14] sm:$0xf] %vm614, %v555
      %621 = vst.msk [vmem:[%s145 + $0x18] sm:$0xf] %vm614, %v556
      %622 = vst.msk [vmem:[%s145 + $0x1c] sm:$0xf] %vm614, %v557
      %623 = vst.msk [vmem:[%s145 + $0x20] sm:$0xf] %vm614, %v558
      %624 = vst.msk [vmem:[%s145 + $0x24] sm:$0xf] %vm614, %v559
      %625 = vst.msk [vmem:[%s145 + $0x28] sm:$0xf] %vm614, %v560
      %626 = vst.msk [vmem:[%s145 + $0x2c] sm:$0xf] %vm614, %v561
      %627 = vst.msk [vmem:[%s145 + $0x30] sm:$0xf] %vm614, %v562
      %628 = vst.msk [vmem:[%s145 + $0x34] sm:$0xf] %vm614, %v563
      %629 = vst.msk [vmem:[%s145 + $0x38] sm:$0xf] %vm614, %v564
      %630 = vst.msk [vmem:[%s145 + $0x3c] sm:$0xf] %vm614, %v565
      %631 = vst.msk [vmem:[%s145 + $0x40] sm:$0xf] %vm614, %v566
      %632 = vst.msk [vmem:[%s145 + $0x44] sm:$0xf] %vm614, %v567
      %633 = vst.msk [vmem:[%s145 + $0x48] sm:$0xf] %vm614, %v568
      %634 = vst.msk [vmem:[%s145 + $0x4c] sm:$0xf] %vm614, %v569
      %635 = vst.msk [vmem:[%s145 + $0x50] sm:$0xf] %vm614, %v570
      %636 = vst.msk [vmem:[%s145 + $0x54] sm:$0xf] %vm614, %v571
      %637 = vst.msk [vmem:[%s145 + $0x58] sm:$0xf] %vm614, %v572
      %638 = vst.msk [vmem:[%s145 + $0x5c] sm:$0xf] %vm614, %v573
      %639 = vst.msk [vmem:[%s145 + $0x60] sm:$0xf] %vm614, %v574
      %640 = vst.msk [vmem:[%s145 + $0x64] sm:$0xf] %vm614, %v575
      %641 = vst.msk [vmem:[%s145 + $0x68] sm:$0xf] %vm614, %v576
      %642 = vst.msk [vmem:[%s145 + $0x6c] sm:$0xf] %vm614, %v577
      %643 = vst.msk [vmem:[%s145 + $0x70] sm:$0xf] %vm614, %v578
      %644 = vst.msk [vmem:[%s145 + $0x74] sm:$0xf] %vm614, %v579
      %645 = vst.msk [vmem:[%s145 + $0x78] sm:$0xf] %vm614, %v580
      %646 = vst.msk [vmem:[%s145 + $0x7c] sm:$0xf] %vm614, %v581
      %s647 = smul.u32 32, %s13
      %p648 = scmp.lt.s32.totalorder %s647, 255
      %s649 = scalar_select %p648, %s647, 255
      %s650 = smul.addr %s649, 4
      %s651 = scalar_lea.vmem %s2, %s650
      // Predicated region
      $region29: #{_lambda_.2} parent=27 // pred_check
        %p652 = pneg %p78
      $region30: #{_lambda_.2} parent=27 // pred_check_branch
        %654 = sbr.rel (%p652) target = $region32
      $region31: #{_lambda_.2} parent=27 // pred_region
        %s655 = smul.u32 32, %s13
      $region32: #{_lambda_.2} parent=27 // pred_fallthru
        _
    $region28: #{_lambda_.2} parent=5 // pred_fallthru
      _
    %p656 = scmp.le.s32.totalorder 2, %s8
    // Predicated region
    $region33: #{_lambda_.2} parent=5 // pred_check
      %p657 = pneg %p656
    $region34: #{_lambda_.2} parent=5 // pred_check_branch
      %659 = sbr.rel (%p657) target = $region36
    $region35: #{_lambda_.2} parent=5 // pred_region
      %s660 = ssub.s32 %s8, 2
      // Predicated region
      $region37: #{_lambda_.2} parent=35 // pred_check
        %p661 = pneg %p84
      $region38: #{_lambda_.2} parent=35 // pred_check_branch
        %663 = sbr.rel (%p661) target = $region40
      $region39: #{_lambda_.2} parent=35 // pred_region
        %s664 = smul.u32 32, %s14
        %p665 = scmp.lt.s32.totalorder %s664, 255
        %s666 = scalar_select %p665, %s664, 255
        %s667 = smul.addr %s666, 4
        %s668 = scalar_lea.vmem %s2, %s667
      $region40: #{_lambda_.2} parent=35 // pred_fallthru
        _
    $region36: #{_lambda_.2} parent=5 // pred_fallthru
      _
  $region6: #{_lambda_.2} parent=0 // loop_footer
    %s12 = sadd.s32 1, %s8
  $region7: #{_lambda_.2} parent=0 // loop_footer_branch
    %7 = sbr.rel target = $region3
  $region8: #{_lambda_.2} parent=0 // loop_exit
    _

// kernel: _lambda_.3
$region0: #{_lambda_.3}
  #allocation0 [shape = 'u32[]', space=smem, size = 0x4, offset = 0x4, fixed_abs, tag = 'smem constant byte address 0x4 - core index']
  #allocation1 [shape = 'u32[144,128]{1,0:T(1,128)}', space=vmem, size = 0x12000, scoped, tag = 'internal scratch']
  #allocation2 [shape = 'f32[64,1]{1,0:T(8,128)}', space=vmem, size = 0x8000, scoped, tag = 'scratch operand']
  #allocation3 [shape = 'f32[64,1]{1,0:T(8,128)}', space=vmem, size = 0x8000, scoped, tag = 'scratch operand']
  #allocation4 [shape = 'f32[64,256]{1,0:T(8,128)}', space=vmem, size = 0x10000, scoped, tag = 'scratch operand']
  %s0 = inlined_call_operand.vmem [shape: bf16[2,128,256], index: 0, kind: input, shape index: {}]
  %s1 = inlined_call_operand.vmem [shape: bf16[2,128,256], index: 1, kind: input, shape index: {}]
  %s2 = inlined_call_operand.vmem [shape: bf16[2,128,256], index: 2, kind: input, shape index: {}]
  %s3 = inlined_call_operand.vmem [shape: f32[2,128,256], index: 3, kind: output, shape index: {}]
  %s4 = sld [smem:[#allocation0]]
  $region53: #{_lambda_.3} parent=0
    _
  %s6 = ssub.s32 1, %s4
  %s7 = scalar_select 0, %s6, %s4
  loop: start=0, step=1, limit=10
  $region2: #{_lambda_.3} parent=0 // loop_pre_header
    _
  $region3: #{_lambda_.3} parent=0 // loop_header
    %s9 = sphi 0, %s13
    %p10 = scmp.ge.s32.totalorder %s9, 10
    %s16 = sphi 0, %s35
    %s17 = sphi 0, %s31
    %s18 = sphi 0, %s27
    %s19 = sphi 0, %s16
    %s20 = sphi 0, %s17
    %s21 = sphi 0, %s18
    %s22 = sphi 0, %s19
    %s23 = sphi 0, %s20
    %s24 = sphi 0, %s21
    %s40 = sphi 0, %s42
    %s43 = sphi 0, %s40
    %s44 = sphi 0, %s43
    %s60 = sphi 0, %s44
    %s68 = sphi 0, %s70
    %s71 = sphi 0, %s68
    %s72 = sphi 0, %s71
    %s88 = sphi 0, %s72
    %s96 = sphi 0, %s98
    %s99 = sphi 0, %s96
    %s100 = sphi 0, %s99
    %s116 = sphi 0, %s100
    %s124 = sphi 0, %s126
    %s127 = sphi 0, %s124
    %s128 = sphi 0, %s127
    %s144 = sphi 0, %s128
  $region4: #{_lambda_.3} parent=0 // loop_header_branch
    %12 = sbr.rel (%p10) target = $region8
  $region5: #{_lambda_.3} parent=0 // loop_body
    %s14 = ssub.s32 %s9, 1
    %s15 = ssub.s32 %s9, 2
    %s25 = sadd.s32 1, %s18
    %p26 = scmp.ge.s32.totalorder %s25, 2
    %s27 = scalar_select %p26, 0, %s25
    %s28 = sadd.s32 1, %s17
    %s29 = scalar_select %p26, %s28, %s17
    %p30 = scmp.ge.s32.totalorder %s29, 2
    %s31 = scalar_select %p30, 0, %s29
    %s32 = sadd.s32 1, %s16
    %s33 = scalar_select %p30, %s32, %s16
    %p34 = scmp.ge.s32.totalorder %s33, 2
    %s35 = scalar_select %p34, 0, %s33
    %s36 = ssub.s32 %s16, %s35
    %s37 = ssub.s32 %s17, %s31
    %s38 = sor.u32 %s36, %s37
    %p39 = scmp.eq.s32.totalorder %s38, 0
    %s41 = sadd.s32 %s40, 1
    %s42 = scalar_select %p39, %s40, %s41
    %p45 = pneg %p39
    %p46 = scmp.eq.s32.totalorder %s9, 7
    %p47 = por %p45, %p46
    %p48 = scmp.ne.s32.totalorder %s40, %s43
    %p49 = scmp.eq.s32.totalorder %s9, 0
    %p50 = por %p48, %p49
    %p51 = scmp.ne.s32.totalorder %s40, %s43
    %p52 = scmp.eq.s32.totalorder %s14, 7
    %p53 = por %p51, %p52
    %p54 = scmp.ne.s32.totalorder %s43, %s44
    %p55 = scmp.eq.s32.totalorder %s14, 0
    %p56 = por %p54, %p55
    %p57 = scmp.ne.s32.totalorder %s43, %s44
    %p58 = scmp.eq.s32.totalorder %s15, 7
    %p59 = por %p57, %p58
    %p61 = scmp.ne.s32.totalorder %s44, %s60
    %p62 = scmp.eq.s32.totalorder %s15, 0
    %p63 = por %p61, %p62
    %s64 = ssub.s32 %s16, %s35
    %s65 = ssub.s32 %s18, %s27
    %s66 = sor.u32 %s64, %s65
    %p67 = scmp.eq.s32.totalorder %s66, 0
    %s69 = sadd.s32 %s68, 1
    %s70 = scalar_select %p67, %s68, %s69
    %p73 = pneg %p67
    %p74 = scmp.eq.s32.totalorder %s9, 7
    %p75 = por %p73, %p74
    %p76 = scmp.ne.s32.totalorder %s68, %s71
    %p77 = scmp.eq.s32.totalorder %s9, 0
    %p78 = por %p76, %p77
    %p79 = scmp.ne.s32.totalorder %s68, %s71
    %p80 = scmp.eq.s32.totalorder %s14, 7
    %p81 = por %p79, %p80
    %p82 = scmp.ne.s32.totalorder %s71, %s72
    %p83 = scmp.eq.s32.totalorder %s14, 0
    %p84 = por %p82, %p83
    %p85 = scmp.ne.s32.totalorder %s71, %s72
    %p86 = scmp.eq.s32.totalorder %s15, 7
    %p87 = por %p85, %p86
    %p89 = scmp.ne.s32.totalorder %s72, %s88
    %p90 = scmp.eq.s32.totalorder %s15, 0
    %p91 = por %p89, %p90
    %s92 = ssub.s32 %s16, %s35
    %s93 = ssub.s32 %s18, %s27
    %s94 = sor.u32 %s92, %s93
    %p95 = scmp.eq.s32.totalorder %s94, 0
    %s97 = sadd.s32 %s96, 1
    %s98 = scalar_select %p95, %s96, %s97
    %p101 = pneg %p95
    %p102 = scmp.eq.s32.totalorder %s9, 7
    %p103 = por %p101, %p102
    %p104 = scmp.ne.s32.totalorder %s96, %s99
    %p105 = scmp.eq.s32.totalorder %s9, 0
    %p106 = por %p104, %p105
    %p107 = scmp.ne.s32.totalorder %s96, %s99
    %p108 = scmp.eq.s32.totalorder %s14, 7
    %p109 = por %p107, %p108
    %p110 = scmp.ne.s32.totalorder %s99, %s100
    %p111 = scmp.eq.s32.totalorder %s14, 0
    %p112 = por %p110, %p111
    %p113 = scmp.ne.s32.totalorder %s99, %s100
    %p114 = scmp.eq.s32.totalorder %s15, 7
    %p115 = por %p113, %p114
    %p117 = scmp.ne.s32.totalorder %s100, %s116
    %p118 = scmp.eq.s32.totalorder %s15, 0
    %p119 = por %p117, %p118
    %s120 = ssub.s32 %s16, %s35
    %s121 = ssub.s32 %s17, %s31
    %s122 = sor.u32 %s120, %s121
    %p123 = scmp.eq.s32.totalorder %s122, 0
    %s125 = sadd.s32 %s124, 1
    %s126 = scalar_select %p123, %s124, %s125
    %p129 = pneg %p123
    %p130 = scmp.eq.s32.totalorder %s9, 7
    %p131 = por %p129, %p130
    %p132 = scmp.ne.s32.totalorder %s124, %s127
    %p133 = scmp.eq.s32.totalorder %s9, 0
    %p134 = por %p132, %p133
    %p135 = scmp.ne.s32.totalorder %s124, %s127
    %p136 = scmp.eq.s32.totalorder %s14, 7
    %p137 = por %p135, %p136
    %p138 = scmp.ne.s32.totalorder %s127, %s128
    %p139 = scmp.eq.s32.totalorder %s14, 0
    %p140 = por %p138, %p139
    %p141 = scmp.ne.s32.totalorder %s127, %s128
    %p142 = scmp.eq.s32.totalorder %s15, 7
    %p143 = por %p141, %p142
    %p145 = scmp.ne.s32.totalorder %s128, %s144
    %p146 = scmp.eq.s32.totalorder %s15, 0
    %p147 = por %p145, %p146
    %p148 = scmp.le.s32.totalorder 1, %s9
    %p149 = scmp.lt.s32.totalorder %s9, 9
    %p150 = pnand %p148, %p149
    %p151 = pneg %p150
    // Predicated region
    $region9: #{_lambda_.3} parent=5 // pred_check
      _
    $region10: #{_lambda_.3} parent=5 // pred_check_branch
      %153 = sbr.rel (%p150) target = $region12
    $region11: #{_lambda_.3} parent=5 // pred_region
      %s154 = ssub.s32 %s9, 1
    $region12: #{_lambda_.3} parent=5 // pred_fallthru
      _
    %p155 = scmp.lt.s32.totalorder %s9, 8
    // Predicated region
    $region13: #{_lambda_.3} parent=5 // pred_check
      %p156 = pneg %p155
    $region14: #{_lambda_.3} parent=5 // pred_check_branch
      %158 = sbr.rel (%p156) target = $region16
    $region15: #{_lambda_.3} parent=5 // pred_region
      // Predicated region
      $region17: #{_lambda_.3} parent=15 // pred_check
        %p159 = pneg %p50
      $region18: #{_lambda_.3} parent=15 // pred_check_branch
        %161 = sbr.rel (%p159) target = $region20
      $region19: #{_lambda_.3} parent=15 // pred_region
        %s162 = smul.u32 8, %s17
        %p163 = scmp.lt.s32.totalorder %s16, 1
        %s164 = scalar_select %p163, %s16, 1
        %p165 = scmp.lt.s32.totalorder %s162, 15
        %s166 = scalar_select %p165, %s162, 15
        %s167 = smul.addr %s166, 2
        %s168 = smul.addr %s164, 32
        %s169 = sadd.s32 %s167, %s168
        %s170 = smul.addr %s169, 4
        %s171 = scalar_lea.vmem %s0, %s170
        %s172 = smul.u32 8, %s17
      $region20: #{_lambda_.3} parent=15 // pred_fallthru
        _
      // Predicated region
      $region21: #{_lambda_.3} parent=15 // pred_check
        %p173 = pneg %p78
      $region22: #{_lambda_.3} parent=15 // pred_check_branch
        %175 = sbr.rel (%p173) target = $region24
      $region23: #{_lambda_.3} parent=15 // pred_region
        %s176 = smul.u32 8, %s18
        %p177 = scmp.lt.s32.totalorder %s16, 1
        %s178 = scalar_select %p177, %s16, 1
        %p179 = scmp.lt.s32.totalorder %s176, 15
        %s180 = scalar_select %p179, %s176, 15
        %s181 = smul.addr %s180, 2
        %s182 = smul.addr %s178, 32
        %s183 = sadd.s32 %s181, %s182
        %s184 = smul.addr %s183, 4
        %s185 = scalar_lea.vmem %s1, %s184
        %s186 = smul.u32 8, %s18
      $region24: #{_lambda_.3} parent=15 // pred_fallthru
        _
      // Predicated region
      $region25: #{_lambda_.3} parent=15 // pred_check
        %p187 = pneg %p106
      $region26: #{_lambda_.3} parent=15 // pred_check_branch
        %189 = sbr.rel (%p187) target = $region28
      $region27: #{_lambda_.3} parent=15 // pred_region
        %s190 = smul.u32 8, %s18
        %p191 = scmp.lt.s32.totalorder %s16, 1
        %s192 = scalar_select %p191, %s16, 1
        %p193 = scmp.lt.s32.totalorder %s190, 15
        %s194 = scalar_select %p193, %s190, 15
        %s195 = smul.addr %s194, 2
        %s196 = smul.addr %s192, 32
        %s197 = sadd.s32 %s195, %s196
        %s198 = smul.addr %s197, 4
        %s199 = scalar_lea.vmem %s2, %s198
        %s200 = smul.u32 8, %s18
      $region28: #{_lambda_.3} parent=15 // pred_fallthru
        _
    $region16: #{_lambda_.3} parent=5 // pred_fallthru
      _
    %p201 = scmp.le.s32.totalorder 1, %s9
    %p202 = scmp.lt.s32.totalorder %s9, 9
    %p203 = pnand %p201, %p202
    %p204 = pneg %p203
    // Predicated region
    $region29: #{_lambda_.3} parent=5 // pred_check
      _
    $region30: #{_lambda_.3} parent=5 // pred_check_branch
      %206 = sbr.rel (%p203) target = $region32
    $region31: #{_lambda_.3} parent=5 // pred_region
      %s207 = ssub.s32 %s9, 1
      %s208 = smul.u32 8, %s20
      %p209 = scmp.lt.s32.totalorder %s19, 1
      %s210 = scalar_select %p209, %s19, 1
      %p211 = scmp.lt.s32.totalorder %s208, 15
      %s212 = scalar_select %p211, %s208, 15
      %s213 = smul.addr %s212, 2
      %s214 = smul.addr %s210, 32
      %s215 = sadd.s32 %s213, %s214
      %s216 = smul.addr %s215, 4
      %s217 = scalar_lea.vmem %s0, %s216
      %p218 = pneg %p56
      %p219 = pneg %p53
      %s220 = smul.u32 8, %s21
      %p221 = scmp.lt.s32.totalorder %s19, 1
      %s222 = scalar_select %p221, %s19, 1
      %p223 = scmp.lt.s32.totalorder %s220, 15
      %s224 = scalar_select %p223, %s220, 15
      %s225 = smul.addr %s224, 2
      %s226 = smul.addr %s222, 32
      %s227 = sadd.s32 %s225, %s226
      %s228 = smul.addr %s227, 4
      %s229 = scalar_lea.vmem %s1, %s228
      %p230 = pneg %p84
      %p231 = pneg %p81
      %s232 = smul.u32 8, %s21
      %p233 = scmp.lt.s32.totalorder %s19, 1
      %s234 = scalar_select %p233, %s19, 1
      %p235 = scmp.lt.s32.totalorder %s232, 15
      %s236 = scalar_select %p235, %s232, 15
      %s237 = smul.addr %s236, 2
      %s238 = smul.addr %s234, 32
      %s239 = sadd.s32 %s237, %s238
      %s240 = smul.addr %s239, 4
      %s241 = scalar_lea.vmem %s2, %s240
      %p242 = pneg %p112
      %p243 = pneg %p109
      %p244 = pneg %p140
      %p245 = pneg %p137
      %s246 = smul.u32 8, %s20
      %p247 = scmp.lt.s32.totalorder %s19, 1
      %s248 = scalar_select %p247, %s19, 1
      %p249 = scmp.lt.s32.totalorder %s246, 15
      %s250 = scalar_select %p249, %s246, 15
      %s251 = smul.addr %s250, 2
      %s252 = smul.addr %s248, 32
      %s253 = sadd.s32 %s251, %s252
      %s254 = smul.addr %s253, 8
      %s255 = scalar_lea.vmem %s3, %s254
      %s256 = smul.u32 8, %s20
      %p257 = scmp.lt.s32.totalorder %s19, 1
      %s258 = scalar_select %p257, %s19, 1
      %p259 = scmp.lt.s32.totalorder %s256, 15
      %s260 = scalar_select %p259, %s256, 15
      %s261 = smul.addr %s260, 2
      %s262 = smul.addr %s258, 32
      %s263 = sadd.s32 %s261, %s262
      %s264 = smul.addr %s263, 4
      %s265 = scalar_lea.vmem %s0, %s264
      %s266 = smul.u32 8, %s20
      %s267 = smul.u32 8, %s21
      %p268 = scmp.lt.s32.totalorder %s19, 1
      %s269 = scalar_select %p268, %s19, 1
      %p270 = scmp.lt.s32.totalorder %s267, 15
      %s271 = scalar_select %p270, %s267, 15
      %s272 = smul.addr %s271, 2
      %s273 = smul.addr %s269, 32
      %s274 = sadd.s32 %s272, %s273
      %s275 = smul.addr %s274, 4
      %s276 = scalar_lea.vmem %s1, %s275
      %s277 = smul.u32 8, %s21
      %s278 = smul.u32 8, %s21
      %p279 = scmp.lt.s32.totalorder %s19, 1
      %s280 = scalar_select %p279, %s19, 1
      %p281 = scmp.lt.s32.totalorder %s278, 15
      %s282 = scalar_select %p281, %s278, 15
      %s283 = smul.addr %s282, 2
      %s284 = smul.addr %s280, 32
      %s285 = sadd.s32 %s283, %s284
      %s286 = smul.addr %s285, 4
      %s287 = scalar_lea.vmem %s2, %s286
      %s288 = smul.u32 8, %s21
      %s289 = smul.u32 8, %s20
      %p290 = scmp.lt.s32.totalorder %s19, 1
      %s291 = scalar_select %p290, %s19, 1
      %p292 = scmp.lt.s32.totalorder %s289, 15
      %s293 = scalar_select %p292, %s289, 15
      %s294 = smul.addr %s293, 2
      %s295 = smul.addr %s291, 32
      %s296 = sadd.s32 %s294, %s295
      %s297 = smul.addr %s296, 8
      %s298 = scalar_lea.vmem %s3, %s297
      %s299 = smul.u32 8, %s20
      %p301 = scmp.eq.s32.totalorder %s21, 0
      // Predicated region
      $region33: #{_lambda_.3} parent=31 // pred_check
        %p302 = pneg %p301
      $region34: #{_lambda_.3} parent=31 // pred_check_branch
        %304 = sbr.rel (%p302) target = $region36
      $region35: #{_lambda_.3} parent=31 // pred_region
        %vm305 = vcmask 7168
        %306 = vst.msk [vmem:[#allocation2] sm:$0xff] %vm305, -inf
        %307 = vst.msk [vmem:[#allocation2 + $0x8] sm:$0xff] %vm305, -inf
        %308 = vst.msk [vmem:[#allocation2 + $0x10] sm:$0xff] %vm305, -inf
        %309 = vst.msk [vmem:[#allocation2 + $0x18] sm:$0xff] %vm305, -inf
        %310 = vst.msk [vmem:[#allocation2 + $0x20] sm:$0xff] %vm305, -inf
        %311 = vst.msk [vmem:[#allocation2 + $0x28] sm:$0xff] %vm305, -inf
        %312 = vst.msk [vmem:[#allocation2 + $0x30] sm:$0xff] %vm305, -inf
        %313 = vst.msk [vmem:[#allocation2 + $0x38] sm:$0xff] %vm305, -inf
        %314 = vst.msk [vmem:[#allocation3] sm:$0xff] %vm305, 0.0
        %315 = vst.msk [vmem:[#allocation3 + $0x8] sm:$0xff] %vm305, 0.0
        %316 = vst.msk [vmem:[#allocation3 + $0x10] sm:$0xff] %vm305, 0.0
        %317 = vst.msk [vmem:[#allocation3 + $0x18] sm:$0xff] %vm305, 0.0
        %318 = vst.msk [vmem:[#allocation3 + $0x20] sm:$0xff] %vm305, 0.0
        %319 = vst.msk [vmem:[#allocation3 + $0x28] sm:$0xff] %vm305, 0.0
        %320 = vst.msk [vmem:[#allocation3 + $0x30] sm:$0xff] %vm305, 0.0
        %321 = vst.msk [vmem:[#allocation3 + $0x38] sm:$0xff] %vm305, 0.0
        %322 = vst [vmem:[#allocation4] sm:$0xff] 0.0
        %323 = vst [vmem:[#allocation4 + $0x8] sm:$0xff] 0.0
        %324 = vst [vmem:[#allocation4 + $0x10] sm:$0xff] 0.0
        %325 = vst [vmem:[#allocation4 + $0x18] sm:$0xff] 0.0
        %326 = vst [vmem:[#allocation4 + $0x20] sm:$0xff] 0.0
        %327 = vst [vmem:[#allocation4 + $0x28] sm:$0xff] 0.0
        %328 = vst [vmem:[#allocation4 + $0x30] sm:$0xff] 0.0
        %329 = vst [vmem:[#allocation4 + $0x38] sm:$0xff] 0.0
        %330 = vst [vmem:[#allocation4 + $0x40] sm:$0xff] 0.0
        %331 = vst [vmem:[#allocation4 + $0x48] sm:$0xff] 0.0
        %332 = vst [vmem:[#allocation4 + $0x50] sm:$0xff] 0.0
        %333 = vst [vmem:[#allocation4 + $0x58] sm:$0xff] 0.0
        %334 = vst [vmem:[#allocation4 + $0x60] sm:$0xff] 0.0
        %335 = vst [vmem:[#allocation4 + $0x68] sm:$0xff] 0.0
        %336 = vst [vmem:[#allocation4 + $0x70] sm:$0xff] 0.0
        %337 = vst [vmem:[#allocation4 + $0x78] sm:$0xff] 0.0
      $region36: #{_lambda_.3} parent=31 // pred_fallthru
        _
      %v338 = vld [vmem:[%s265] sm:$0xff]
      %v339 = vld [vmem:[%s265 + $0x8] sm:$0xff]
      %v340 = vld [vmem:[%s265 + $0x10] sm:$0xff]
      %v341 = vld [vmem:[%s265 + $0x18] sm:$0xff]
      %v342 = vld [vmem:[%s265 + $0x20] sm:$0xff]
      %v343 = vld [vmem:[%s265 + $0x28] sm:$0xff]
      %v344 = vld [vmem:[%s265 + $0x30] sm:$0xff]
      %v345 = vld [vmem:[%s265 + $0x38] sm:$0xff]
      %v346 = vld [vmem:[%s276] sm:$0xff]
      %v347 = vld [vmem:[%s276 + $0x8] sm:$0xff]
      %v348 = vld [vmem:[%s276 + $0x10] sm:$0xff]
      %v349 = vld [vmem:[%s276 + $0x18] sm:$0xff]
      %v350 = vld [vmem:[%s276 + $0x20] sm:$0xff]
      %v351 = vld [vmem:[%s276 + $0x28] sm:$0xff]
      %v352 = vld [vmem:[%s276 + $0x30] sm:$0xff]
      %v353 = vld [vmem:[%s276 + $0x38] sm:$0xff]
      %v362 = vunpack.c.l.b16 %v338
      %v363 = vunpack.c.h.b16 %v338
      %v364 = vunpack.c.l.b16 %v339
      %v365 = vunpack.c.h.b16 %v339
      %v366 = vunpack.c.l.b16 %v340
      %v367 = vunpack.c.h.b16 %v340
      %v368 = vunpack.c.l.b16 %v341
      %v369 = vunpack.c.h.b16 %v341
      %v370 = vunpack.c.l.b16 %v342
      %v371 = vunpack.c.h.b16 %v342
      %v372 = vunpack.c.l.b16 %v343
      %v373 = vunpack.c.h.b16 %v343
      %v374 = vunpack.c.l.b16 %v344
      %v375 = vunpack.c.h.b16 %v344
      %v376 = vunpack.c.l.b16 %v345
      %v377 = vunpack.c.h.b16 %v345
      %v378 = vpack.c.b16 %v364, %v362
      %v379 = vpack.c.b16 %v365, %v363
      %v380 = vpack.c.b16 %v368, %v366
      %v381 = vpack.c.b16 %v369, %v367
      %v382 = vpack.c.b16 %v372, %v370
      %v383 = vpack.c.b16 %v373, %v371
      %v384 = vpack.c.b16 %v376, %v374
      %v385 = vpack.c.b16 %v377, %v375
      %v402 = vunpack.c.l.b16 %v346
      %v403 = vunpack.c.h.b16 %v346
      %v404 = vunpack.c.l.b16 %v347
      %v405 = vunpack.c.h.b16 %v347
      %v406 = vunpack.c.l.b16 %v348
      %v407 = vunpack.c.h.b16 %v348
      %v408 = vunpack.c.l.b16 %v349
      %v409 = vunpack.c.h.b16 %v349
      %v410 = vunpack.c.l.b16 %v350
      %v411 = vunpack.c.h.b16 %v350
      %v412 = vunpack.c.l.b16 %v351
      %v413 = vunpack.c.h.b16 %v351
      %v414 = vunpack.c.l.b16 %v352
      %v415 = vunpack.c.h.b16 %v352
      %v416 = vunpack.c.l.b16 %v353
      %v417 = vunpack.c.h.b16 %v353
      %v418 = vpack.c.b16 %v404, %v402
      %v419 = vpack.c.b16 %v405, %v403
      %v420 = vpack.c.b16 %v408, %v406
      %v421 = vpack.c.b16 %v409, %v407
      %v422 = vpack.c.b16 %v412, %v410
      %v423 = vpack.c.b16 %v413, %v411
      %v424 = vpack.c.b16 %v416, %v414
      %v425 = vpack.c.b16 %v417, %v415
      %434 = vmatprep.subr.bf16.mxu0 %v419
      %435 = vmatpush1.bf16.xpose.msra.mxu0 %v418
      %436 = vmatprep.subr.bf16.mxu0 %v421
      %437 = vmatpush1.bf16.xpose.msra.mxu0 %v420
      %438 = vmatprep.subr.bf16.mxu0 %v423
      %439 = vmatpush1.bf16.xpose.msra.mxu0 %v422
      %440 = vmatprep.subr.bf16.mxu0 %v425
      %441 = vmatpush1.bf16.xpose.msra.mxu0 %v424
      %442 = vmatprep.subr.bf16.mxu0 0
      %443 = vmatpush1.bf16.xpose.msra.mxu0 0
      %444 = vmatprep.subr.bf16.mxu0 0
      %445 = vmatpush1.bf16.xpose.msra.mxu0 0
      %446 = vmatprep.subr.bf16.mxu0 0
      %447 = vmatpush1.bf16.xpose.msra.mxu0 0
      %448 = vmatprep.subr.bf16.mxu0 0
      %449 = vmatpush1.bf16.xpose.msra.mxu0 0
      %450 = vmatprep.subr.bf16.mxu0 0
      %451 = vmatpush1.bf16.xpose.msra.mxu0 0
      %452 = vmatprep.subr.bf16.mxu0 0
      %453 = vmatpush1.bf16.xpose.msra.mxu0 0
      %454 = vmatprep.subr.bf16.mxu0 0
      %455 = vmatpush1.bf16.xpose.msra.mxu0 0
      %456 = vmatprep.subr.bf16.mxu0 0
      %457 = vmatpush1.bf16.xpose.msra.mxu0 0
      %458 = vmatprep.subr.bf16.mxu0 0
      %459 = vmatpush1.bf16.xpose.msra.mxu0 0
      %460 = vmatprep.subr.bf16.mxu0 0
      %461 = vmatpush1.bf16.xpose.msra.mxu0 0
      %462 = vmatprep.subr.bf16.mxu0 0
      %463 = vmatpush1.bf16.xpose.msra.mxu0 0
      %464 = vmatprep.subr.bf16.mxu0 0
      %465 = vmatpush1.bf16.xpose.msra.mxu0 0
      %466 = vmatprep.mubr.bf16.mxu0 %v379
      %467 = vmatmul.mubr.bf16.gmra.mrb[0].mxu0 %v378
      %v468 = vpop.f32.mrb[0].mxu0
      %v469 = vadd.f32 0.0, %v468
      %v470 = vpop.f32.mrb[0].mxu0
      %v471 = vpop.f32.mrb[0].mxu0
      %v472 = vadd.f32 0.0, %v471
      %v473 = vpop.f32.mrb[0].mxu0
      %474 = vmatprep.mubr.bf16.mxu0 %v381
      %475 = vmatmul.mubr.bf16.gmra.mrb[0].mxu0 %v380
      %v476 = vpop.f32.mrb[0].mxu0
      %v477 = vadd.f32 0.0, %v476
      %v478 = vpop.f32.mrb[0].mxu0
      %v479 = vpop.f32.mrb[0].mxu0
      %v480 = vadd.f32 0.0, %v479
      %v481 = vpop.f32.mrb[0].mxu0
      %482 = vmatprep.mubr.bf16.mxu0 %v383
      %483 = vmatmul.mubr.bf16.gmra.mrb[0].mxu0 %v382
      %v484 = vpop.f32.mrb[0].mxu0
      %v485 = vadd.f32 0.0, %v484
      %v486 = vpop.f32.mrb[0].mxu0
      %v487 = vpop.f32.mrb[0].mxu0
      %v488 = vadd.f32 0.0, %v487
      %v489 = vpop.f32.mrb[0].mxu0
      %490 = vmatprep.mubr.bf16.mxu0 %v385
      %491 = vmatmul.mubr.bf16.gmra.mrb[0].mxu0 %v384
      %v492 = vpop.f32.mrb[0].mxu0
      %v493 = vadd.f32 0.0, %v492
      %v494 = vpop.f32.mrb[0].mxu0
      %v495 = vpop.f32.mrb[0].mxu0
      %v496 = vadd.f32 0.0, %v495
      %v497 = vpop.f32.mrb[0].mxu0
      %498 = vdwg.mxu0
      %v499 = vld [vmem:[#allocation2] sm:$0xff]
      %v500 = vld [vmem:[#allocation2 + $0x8] sm:$0xff]
      %v501 = vld [vmem:[#allocation2 + $0x10] sm:$0xff]
      %v502 = vld [vmem:[#allocation2 + $0x18] sm:$0xff]
      %v503 = vld [vmem:[#allocation2 + $0x20] sm:$0xff]
      %v504 = vld [vmem:[#allocation2 + $0x28] sm:$0xff]
      %v505 = vld [vmem:[#allocation2 + $0x30] sm:$0xff]
      %v506 = vld [vmem:[#allocation2 + $0x38] sm:$0xff]
      %vm507 = vcmask 523264
      %v508 = vsel %vm507, %v469, -inf
      %509 = vmax.xlane.f32.xlu0 %v508
      %v510 = vpop.xlane.xlu0 %509
      %v511 = vsel %vm507, %v472, -inf
      %512 = vmax.xlane.f32.xlu0 %v511
      %v513 = vpop.xlane.xlu0 %512
      %v514 = vsel %vm507, %v477, -inf
      %515 = vmax.xlane.f32.xlu0 %v514
      %v516 = vpop.xlane.xlu0 %515
      %v517 = vsel %vm507, %v480, -inf
      %518 = vmax.xlane.f32.xlu0 %v517
      %v519 = vpop.xlane.xlu0 %518
      %v520 = vsel %vm507, %v485, -inf
      %521 = vmax.xlane.f32.xlu0 %v520
      %v522 = vpop.xlane.xlu0 %521
      %v523 = vsel %vm507, %v488, -inf
      %524 = vmax.xlane.f32.xlu0 %v523
      %v525 = vpop.xlane.xlu0 %524
      %v526 = vsel %vm507, %v493, -inf
      %527 = vmax.xlane.f32.xlu0 %v526
      %v528 = vpop.xlane.xlu0 %527
      %v529 = vsel %vm507, %v496, -inf
      %530 = vmax.xlane.f32.xlu0 %v529
      %v531 = vpop.xlane.xlu0 %530
      %v532 = vmax.f32 %v499, %v510
      %v533 = vmax.f32 %v500, %v513
      %v534 = vmax.f32 %v501, %v516
      %v535 = vmax.f32 %v502, %v519
      %v536 = vmax.f32 %v503, %v522
      %v537 = vmax.f32 %v504, %v525
      %v538 = vmax.f32 %v505, %v528
      %v539 = vmax.f32 %v506, %v531
      %v540 = vsub.f32 %v499, %v532
      %v541 = vsub.f32 %v500, %v533
      %v542 = vsub.f32 %v501, %v534
      %v543 = vsub.f32 %v502, %v535
      %v544 = vsub.f32 %v503, %v536
      %v545 = vsub.f32 %v504, %v537
      %v546 = vsub.f32 %v505, %v538
      %v547 = vsub.f32 %v506, %v539
      %v548 = vmul.f32 %v540, 1.442695
      %v549 = vpow.pop %v548
      %v550 = vmul.f32 %v541, 1.442695
      %v551 = vpow.pop %v550
      %v552 = vmul.f32 %v542, 1.442695
      %v553 = vpow.pop %v552
      %v554 = vmul.f32 %v543, 1.442695
      %v555 = vpow.pop %v554
      %v556 = vmul.f32 %v544, 1.442695
      %v557 = vpow.pop %v556
      %v558 = vmul.f32 %v545, 1.442695
      %v559 = vpow.pop %v558
      %v560 = vmul.f32 %v546, 1.442695
      %v561 = vpow.pop %v560
      %v562 = vmul.f32 %v547, 1.442695
      %v563 = vpow.pop %v562
      %565 = vset.pattern.permute.xlu0 0
      %566 = vperm.xlu0 %565, %v532
      %v567 = vpop.permute.xlu0 %566
      %570 = vset.pattern.permute.xlu0 0
      %571 = vperm.xlu0 %570, %v533
      %v572 = vpop.permute.xlu0 %571
      %575 = vset.pattern.permute.xlu0 0
      %576 = vperm.xlu0 %575, %v534
      %v577 = vpop.permute.xlu0 %576
      %580 = vset.pattern.permute.xlu0 0
      %581 = vperm.xlu0 %580, %v535
      %v582 = vpop.permute.xlu0 %581
      %585 = vset.pattern.permute.xlu0 0
      %586 = vperm.xlu0 %585, %v536
      %v587 = vpop.permute.xlu0 %586
      %590 = vset.pattern.permute.xlu0 0
      %591 = vperm.xlu0 %590, %v537
      %v592 = vpop.permute.xlu0 %591
      %595 = vset.pattern.permute.xlu0 0
      %596 = vperm.xlu0 %595, %v538
      %v597 = vpop.permute.xlu0 %596
      %600 = vset.pattern.permute.xlu0 0
      %601 = vperm.xlu0 %600, %v539
      %v602 = vpop.permute.xlu0 %601
      %v604 = vsub.f32 %v469, %v567
      %v605 = vsub.f32 %v472, %v572
      %v606 = vsub.f32 %v477, %v577
      %v607 = vsub.f32 %v480, %v582
      %v608 = vsub.f32 %v485, %v587
      %v609 = vsub.f32 %v488, %v592
      %v610 = vsub.f32 %v493, %v597
      %v611 = vsub.f32 %v496, %v602
      %v612 = vmul.f32 %v604, 1.442695
      %v613 = vpow.pop %v612
      %v614 = vmul.f32 %v605, 1.442695
      %v615 = vpow.pop %v614
      %v616 = vmul.f32 %v606, 1.442695
      %v617 = vpow.pop %v616
      %v618 = vmul.f32 %v607, 1.442695
      %v619 = vpow.pop %v618
      %v620 = vmul.f32 %v608, 1.442695
      %v621 = vpow.pop %v620
      %v622 = vmul.f32 %v609, 1.442695
      %v623 = vpow.pop %v622
      %v624 = vmul.f32 %v610, 1.442695
      %v625 = vpow.pop %v624
      %v626 = vmul.f32 %v611, 1.442695
      %v627 = vpow.pop %v626
      %v628 = vld [vmem:[#allocation3] sm:$0xff]
      %v629 = vld [vmem:[#allocation3 + $0x8] sm:$0xff]
      %v630 = vld [vmem:[#allocation3 + $0x10] sm:$0xff]
      %v631 = vld [vmem:[#allocation3 + $0x18] sm:$0xff]
      %v632 = vld [vmem:[#allocation3 + $0x20] sm:$0xff]
      %v633 = vld [vmem:[#allocation3 + $0x28] sm:$0xff]
      %v634 = vld [vmem:[#allocation3 + $0x30] sm:$0xff]
      %v635 = vld [vmem:[#allocation3 + $0x38] sm:$0xff]
      %v636 = vmul.f32 %v549, %v628
      %v637 = vmul.f32 %v551, %v629
      %v638 = vmul.f32 %v553, %v630
      %v639 = vmul.f32 %v555, %v631
      %v640 = vmul.f32 %v557, %v632
      %v641 = vmul.f32 %v559, %v633
      %v642 = vmul.f32 %v561, %v634
      %v643 = vmul.f32 %v563, %v635
      %v644 = vsel %vm507, %v613, 0.0
      %645 = vadd.xlane.f32.xlu0 %v644
      %v646 = vpop.xlane.xlu0 %645
      %v647 = vsel %vm507, %v615, 0.0
      %648 = vadd.xlane.f32.xlu0 %v647
      %v649 = vpop.xlane.xlu0 %648
      %v650 = vsel %vm507, %v617, 0.0
      %651 = vadd.xlane.f32.xlu0 %v650
      %v652 = vpop.xlane.xlu0 %651
      %v653 = vsel %vm507, %v619, 0.0
      %654 = vadd.xlane.f32.xlu0 %v653
      %v655 = vpop.xlane.xlu0 %654
      %v656 = vsel %vm507, %v621, 0.0
      %657 = vadd.xlane.f32.xlu0 %v656
      %v658 = vpop.xlane.xlu0 %657
      %v659 = vsel %vm507, %v623, 0.0
      %660 = vadd.xlane.f32.xlu0 %v659
      %v661 = vpop.xlane.xlu0 %660
      %v662 = vsel %vm507, %v625, 0.0
      %663 = vadd.xlane.f32.xlu0 %v662
      %v664 = vpop.xlane.xlu0 %663
      %v665 = vsel %vm507, %v627, 0.0
      %666 = vadd.xlane.f32.xlu0 %v665
      %v667 = vpop.xlane.xlu0 %666
      %v668 = vadd.f32 %v636, %v646
      %v669 = vadd.f32 %v637, %v649
      %v670 = vadd.f32 %v638, %v652
      %v671 = vadd.f32 %v639, %v655
      %v672 = vadd.f32 %v640, %v658
      %v673 = vadd.f32 %v641, %v661
      %v674 = vadd.f32 %v642, %v664
      %v675 = vadd.f32 %v643, %v667
      %vm676 = vcmask 7168
      %677 = vst.msk [vmem:[#allocation3] sm:$0xff] %vm676, %v668
      %678 = vst.msk [vmem:[#allocation3 + $0x8] sm:$0xff] %vm676, %v669
      %679 = vst.msk [vmem:[#allocation3 + $0x10] sm:$0xff] %vm676, %v670
      %680 = vst.msk [vmem:[#allocation3 + $0x18] sm:$0xff] %vm676, %v671
      %681 = vst.msk [vmem:[#allocation3 + $0x20] sm:$0xff] %vm676, %v672
      %682 = vst.msk [vmem:[#allocation3 + $0x28] sm:$0xff] %vm676, %v673
      %683 = vst.msk [vmem:[#allocation3 + $0x30] sm:$0xff] %vm676, %v674
      %684 = vst.msk [vmem:[#allocation3 + $0x38] sm:$0xff] %vm676, %v675
      %v685 = vld [vmem:[#allocation4] sm:$0xff]
      %v686 = vld [vmem:[#allocation4 + $0x8] sm:$0xff]
      %v687 = vld [vmem:[#allocation4 + $0x10] sm:$0xff]
      %v688 = vld [vmem:[#allocation4 + $0x18] sm:$0xff]
      %v689 = vld [vmem:[#allocation4 + $0x20] sm:$0xff]
      %v690 = vld [vmem:[#allocation4 + $0x28] sm:$0xff]
      %v691 = vld [vmem:[#allocation4 + $0x30] sm:$0xff]
      %v692 = vld [vmem:[#allocation4 + $0x38] sm:$0xff]
      %v693 = vld [vmem:[#allocation4 + $0x40] sm:$0xff]
      %v694 = vld [vmem:[#allocation4 + $0x48] sm:$0xff]
      %v695 = vld [vmem:[#allocation4 + $0x50] sm:$0xff]
      %v696 = vld [vmem:[#allocation4 + $0x58] sm:$0xff]
      %v697 = vld [vmem:[#allocation4 + $0x60] sm:$0xff]
      %v698 = vld [vmem:[#allocation4 + $0x68] sm:$0xff]
      %v699 = vld [vmem:[#allocation4 + $0x70] sm:$0xff]
      %v700 = vld [vmem:[#allocation4 + $0x78] sm:$0xff]
      %702 = vset.pattern.permute.xlu0 0
      %703 = vperm.xlu0 %702, %v549
      %v704 = vpop.permute.xlu0 %703
      %707 = vset.pattern.permute.xlu0 0
      %708 = vperm.xlu0 %707, %v551
      %v709 = vpop.permute.xlu0 %708
      %712 = vset.pattern.permute.xlu0 0
      %713 = vperm.xlu0 %712, %v553
      %v714 = vpop.permute.xlu0 %713
      %717 = vset.pattern.permute.xlu0 0
      %718 = vperm.xlu0 %717, %v555
      %v719 = vpop.permute.xlu0 %718
      %722 = vset.pattern.permute.xlu0 0
      %723 = vperm.xlu0 %722, %v557
      %v724 = vpop.permute.xlu0 %723
      %727 = vset.pattern.permute.xlu0 0
      %728 = vperm.xlu0 %727, %v559
      %v729 = vpop.permute.xlu0 %728
      %732 = vset.pattern.permute.xlu0 0
      %733 = vperm.xlu0 %732, %v561
      %v734 = vpop.permute.xlu0 %733
      %737 = vset.pattern.permute.xlu0 0
      %738 = vperm.xlu0 %737, %v563
      %v739 = vpop.permute.xlu0 %738
      %v741 = vmul.f32 %v704, %v685
      %v742 = vmul.f32 %v704, %v686
      %v743 = vmul.f32 %v709, %v687
      %v744 = vmul.f32 %v709, %v688
      %v745 = vmul.f32 %v714, %v689
      %v746 = vmul.f32 %v714, %v690
      %v747 = vmul.f32 %v719, %v691
      %v748 = vmul.f32 %v719, %v692
      %v749 = vmul.f32 %v724, %v693
      %v750 = vmul.f32 %v724, %v694
      %v751 = vmul.f32 %v729, %v695
      %v752 = vmul.f32 %v729, %v696
      %v753 = vmul.f32 %v734, %v697
      %v754 = vmul.f32 %v734, %v698
      %v755 = vmul.f32 %v739, %v699
      %v756 = vmul.f32 %v739, %v700
      %v757 = vpack.c.bf16 %v615, %v613
      %v758 = vpack.c.bf16 %v619, %v617
      %v759 = vpack.c.bf16 %v623, %v621
      %v760 = vpack.c.bf16 %v627, %v625
      %v761 = vld [vmem:[%s287] sm:$0xff]
      %v762 = vld [vmem:[%s287 + $0x8] sm:$0xff]
      %v763 = vld [vmem:[%s287 + $0x10] sm:$0xff]
      %v764 = vld [vmem:[%s287 + $0x18] sm:$0xff]
      %v765 = vld [vmem:[%s287 + $0x20] sm:$0xff]
      %v766 = vld [vmem:[%s287 + $0x28] sm:$0xff]
      %v767 = vld [vmem:[%s287 + $0x30] sm:$0xff]
      %v768 = vld [vmem:[%s287 + $0x38] sm:$0xff]
      %v777 = vunpack.c.l.b16 %v761
      %v778 = vunpack.c.h.b16 %v761
      %v779 = vunpack.c.l.b16 %v762
      %v780 = vunpack.c.h.b16 %v762
      %v781 = vunpack.c.l.b16 %v763
      %v782 = vunpack.c.h.b16 %v763
      %v783 = vunpack.c.l.b16 %v764
      %v784 = vunpack.c.h.b16 %v764
      %v785 = vunpack.c.l.b16 %v765
      %v786 = vunpack.c.h.b16 %v765
      %v787 = vunpack.c.l.b16 %v766
      %v788 = vunpack.c.h.b16 %v766
      %v789 = vunpack.c.l.b16 %v767
      %v790 = vunpack.c.h.b16 %v767
      %v791 = vunpack.c.l.b16 %v768
      %v792 = vunpack.c.h.b16 %v768
      %v793 = vpack.c.b16 %v779, %v777
      %v794 = vpack.c.b16 %v780, %v778
      %v795 = vpack.c.b16 %v783, %v781
      %v796 = vpack.c.b16 %v784, %v782
      %v797 = vpack.c.b16 %v787, %v785
      %v798 = vpack.c.b16 %v788, %v786
      %v799 = vpack.c.b16 %v791, %v789
      %v800 = vpack.c.b16 %v792, %v790
      %v810 = vsel %vm507, %v757, 0
      %v813 = vsel %vm507, %v758, 0
      %v816 = vsel %vm507, %v759, 0
      %v819 = vsel %vm507, %v760, 0
      %821 = vmatprep.subr.bf16.mxu0 %v794
      %822 = vmatpush1.bf16.msra.mxu0 %v793
      %823 = vmatprep.subr.bf16.mxu0 %v796
      %824 = vmatpush1.bf16.msra.mxu0 %v795
      %825 = vmatprep.subr.bf16.mxu0 %v798
      %826 = vmatpush1.bf16.msra.mxu0 %v797
      %827 = vmatprep.subr.bf16.mxu0 %v800
      %828 = vmatpush1.bf16.msra.mxu0 %v799
      %829 = vmatprep.subr.bf16.mxu0 0
      %830 = vmatpush1.bf16.msra.mxu0 0
      %831 = vmatprep.subr.bf16.mxu0 0
      %832 = vmatpush1.bf16.msra.mxu0 0
      %833 = vmatprep.subr.bf16.mxu0 0
      %834 = vmatpush1.bf16.msra.mxu0 0
      %835 = vmatprep.subr.bf16.mxu0 0
      %836 = vmatpush1.bf16.msra.mxu0 0
      %837 = vmatprep.subr.bf16.mxu0 0
      %838 = vmatpush1.bf16.msra.mxu0 0
      %839 = vmatprep.subr.bf16.mxu0 0
      %840 = vmatpush1.bf16.msra.mxu0 0
      %841 = vmatprep.subr.bf16.mxu0 0
      %842 = vmatpush1.bf16.msra.mxu0 0
      %843 = vmatprep.subr.bf16.mxu0 0
      %844 = vmatpush1.bf16.msra.mxu0 0
      %845 = vmatprep.subr.bf16.mxu0 0
      %846 = vmatpush1.bf16.msra.mxu0 0
      %847 = vmatprep.subr.bf16.mxu0 0
      %848 = vmatpush1.bf16.msra.mxu0 0
      %849 = vmatprep.subr.bf16.mxu0 0
      %850 = vmatpush1.bf16.msra.mxu0 0
      %851 = vmatprep.subr.bf16.mxu0 0
      %852 = vmatpush1.bf16.msra.mxu0 0
      %853 = vmatprep.mubr.bf16.mxu0 0
      %854 = vmatmul.mubr.bf16.gmra.mrb[0].mxu0 %v810
      %v855 = vpop.f32.mrb[0].mxu0
      %v856 = vadd.f32 0.0, %v855
      %v857 = vpop.f32.mrb[0].mxu0
      %v858 = vadd.f32 0.0, %v857
      %v859 = vpop.f32.mrb[0].mxu0
      %v860 = vadd.f32 0.0, %v859
      %v861 = vpop.f32.mrb[0].mxu0
      %v862 = vadd.f32 0.0, %v861
      %863 = vmatprep.mubr.bf16.mxu0 0
      %864 = vmatmul.mubr.bf16.gmra.mrb[0].mxu0 %v813
      %v865 = vpop.f32.mrb[0].mxu0
      %v866 = vadd.f32 0.0, %v865
      %v867 = vpop.f32.mrb[0].mxu0
      %v868 = vadd.f32 0.0, %v867
      %v869 = vpop.f32.mrb[0].mxu0
      %v870 = vadd.f32 0.0, %v869
      %v871 = vpop.f32.mrb[0].mxu0
      %v872 = vadd.f32 0.0, %v871
      %873 = vmatprep.mubr.bf16.mxu0 0
      %874 = vmatmul.mubr.bf16.gmra.mrb[0].mxu0 %v816
      %v875 = vpop.f32.mrb[0].mxu0
      %v876 = vadd.f32 0.0, %v875
      %v877 = vpop.f32.mrb[0].mxu0
      %v878 = vadd.f32 0.0, %v877
      %v879 = vpop.f32.mrb[0].mxu0
      %v880 = vadd.f32 0.0, %v879
      %v881 = vpop.f32.mrb[0].mxu0
      %v882 = vadd.f32 0.0, %v881
      %883 = vmatprep.mubr.bf16.mxu0 0
      %884 = vmatmul.mubr.bf16.gmra.mrb[0].mxu0 %v819
      %v885 = vpop.f32.mrb[0].mxu0
      %v886 = vadd.f32 0.0, %v885
      %v887 = vpop.f32.mrb[0].mxu0
      %v888 = vadd.f32 0.0, %v887
      %v889 = vpop.f32.mrb[0].mxu0
      %v890 = vadd.f32 0.0, %v889
      %v891 = vpop.f32.mrb[0].mxu0
      %v892 = vadd.f32 0.0, %v891
      %893 = vdwg.mxu0
      %v894 = vadd.f32 %v741, %v856
      %v895 = vadd.f32 %v742, %v858
      %v896 = vadd.f32 %v743, %v860
      %v897 = vadd.f32 %v744, %v862
      %v898 = vadd.f32 %v745, %v866
      %v899 = vadd.f32 %v746, %v868
      %v900 = vadd.f32 %v747, %v870
      %v901 = vadd.f32 %v748, %v872
      %v902 = vadd.f32 %v749, %v876
      %v903 = vadd.f32 %v750, %v878
      %v904 = vadd.f32 %v751, %v880
      %v905 = vadd.f32 %v752, %v882
      %v906 = vadd.f32 %v753, %v886
      %v907 = vadd.f32 %v754, %v888
      %v908 = vadd.f32 %v755, %v890
      %v909 = vadd.f32 %v756, %v892
      %910 = vst [vmem:[#allocation4] sm:$0xff] %v894
      %911 = vst [vmem:[#allocation4 + $0x8] sm:$0xff] %v895
      %912 = vst [vmem:[#allocation4 + $0x10] sm:$0xff] %v896
      %913 = vst [vmem:[#allocation4 + $0x18] sm:$0xff] %v897
      %914 = vst [vmem:[#allocation4 + $0x20] sm:$0xff] %v898
      %915 = vst [vmem:[#allocation4 + $0x28] sm:$0xff] %v899
      %916 = vst [vmem:[#allocation4 + $0x30] sm:$0xff] %v900
      %917 = vst [vmem:[#allocation4 + $0x38] sm:$0xff] %v901
      %918 = vst [vmem:[#allocation4 + $0x40] sm:$0xff] %v902
      %919 = vst [vmem:[#allocation4 + $0x48] sm:$0xff] %v903
      %920 = vst [vmem:[#allocation4 + $0x50] sm:$0xff] %v904
      %921 = vst [vmem:[#allocation4 + $0x58] sm:$0xff] %v905
      %922 = vst [vmem:[#allocation4 + $0x60] sm:$0xff] %v906
      %923 = vst [vmem:[#allocation4 + $0x68] sm:$0xff] %v907
      %924 = vst [vmem:[#allocation4 + $0x70] sm:$0xff] %v908
      %925 = vst [vmem:[#allocation4 + $0x78] sm:$0xff] %v909
      %926 = vst.msk [vmem:[#allocation2] sm:$0xff] %vm676, %v532
      %927 = vst.msk [vmem:[#allocation2 + $0x8] sm:$0xff] %vm676, %v533
      %928 = vst.msk [vmem:[#allocation2 + $0x10] sm:$0xff] %vm676, %v534
      %929 = vst.msk [vmem:[#allocation2 + $0x18] sm:$0xff] %vm676, %v535
      %930 = vst.msk [vmem:[#allocation2 + $0x20] sm:$0xff] %vm676, %v536
      %931 = vst.msk [vmem:[#allocation2 + $0x28] sm:$0xff] %vm676, %v537
      %932 = vst.msk [vmem:[#allocation2 + $0x30] sm:$0xff] %vm676, %v538
      %933 = vst.msk [vmem:[#allocation2 + $0x38] sm:$0xff] %vm676, %v539
      %p934 = scmp.eq.s32.totalorder %s21, 1
      // Predicated region
      $region37: #{_lambda_.3} parent=31 // pred_check
        %p935 = pneg %p934
      $region38: #{_lambda_.3} parent=31 // pred_check_branch
        %937 = sbr.rel (%p935) target = $region40
      $region39: #{_lambda_.3} parent=31 // pred_region
        %v938 = vld [vmem:[#allocation4] sm:$0xff]
        %v939 = vld [vmem:[#allocation4 + $0x8] sm:$0xff]
        %v940 = vld [vmem:[#allocation4 + $0x10] sm:$0xff]
        %v941 = vld [vmem:[#allocation4 + $0x18] sm:$0xff]
        %v942 = vld [vmem:[#allocation4 + $0x20] sm:$0xff]
        %v943 = vld [vmem:[#allocation4 + $0x28] sm:$0xff]
        %v944 = vld [vmem:[#allocation4 + $0x30] sm:$0xff]
        %v945 = vld [vmem:[#allocation4 + $0x38] sm:$0xff]
        %v946 = vld [vmem:[#allocation4 + $0x40] sm:$0xff]
        %v947 = vld [vmem:[#allocation4 + $0x48] sm:$0xff]
        %v948 = vld [vmem:[#allocation4 + $0x50] sm:$0xff]
        %v949 = vld [vmem:[#allocation4 + $0x58] sm:$0xff]
        %v950 = vld [vmem:[#allocation4 + $0x60] sm:$0xff]
        %v951 = vld [vmem:[#allocation4 + $0x68] sm:$0xff]
        %v952 = vld [vmem:[#allocation4 + $0x70] sm:$0xff]
        %v953 = vld [vmem:[#allocation4 + $0x78] sm:$0xff]
        %v954 = vld [vmem:[#allocation3] sm:$0xff]
        %v955 = vld [vmem:[#allocation3 + $0x8] sm:$0xff]
        %v956 = vld [vmem:[#allocation3 + $0x10] sm:$0xff]
        %v957 = vld [vmem:[#allocation3 + $0x18] sm:$0xff]
        %v958 = vld [vmem:[#allocation3 + $0x20] sm:$0xff]
        %v959 = vld [vmem:[#allocation3 + $0x28] sm:$0xff]
        %v960 = vld [vmem:[#allocation3 + $0x30] sm:$0xff]
        %v961 = vld [vmem:[#allocation3 + $0x38] sm:$0xff]
        %v962 = vrcp.pop %v954
        %v963 = vrcp.pop %v955
        %v964 = vrcp.pop %v956
        %v965 = vrcp.pop %v957
        %v966 = vrcp.pop %v958
        %v967 = vrcp.pop %v959
        %v968 = vrcp.pop %v960
        %v969 = vrcp.pop %v961
        %971 = vset.pattern.permute.xlu0 0
        %972 = vperm.xlu0 %971, %v962
        %v973 = vpop.permute.xlu0 %972
        %976 = vset.pattern.permute.xlu0 0
        %977 = vperm.xlu0 %976, %v963
        %v978 = vpop.permute.xlu0 %977
        %981 = vset.pattern.permute.xlu0 0
        %982 = vperm.xlu0 %981, %v964
        %v983 = vpop.permute.xlu0 %982
        %986 = vset.pattern.permute.xlu0 0
        %987 = vperm.xlu0 %986, %v965
        %v988 = vpop.permute.xlu0 %987
        %991 = vset.pattern.permute.xlu0 0
        %992 = vperm.xlu0 %991, %v966
        %v993 = vpop.permute.xlu0 %992
        %996 = vset.pattern.permute.xlu0 0
        %997 = vperm.xlu0 %996, %v967
        %v998 = vpop.permute.xlu0 %997
        %1001 = vset.pattern.permute.xlu0 0
        %1002 = vperm.xlu0 %1001, %v968
        %v1003 = vpop.permute.xlu0 %1002
        %1006 = vset.pattern.permute.xlu0 0
        %1007 = vperm.xlu0 %1006, %v969
        %v1008 = vpop.permute.xlu0 %1007
        %v1010 = vmul.f32 %v938, %v973
        %v1011 = vmul.f32 %v939, %v973
        %v1012 = vmul.f32 %v940, %v978
        %v1013 = vmul.f32 %v941, %v978
        %v1014 = vmul.f32 %v942, %v983
        %v1015 = vmul.f32 %v943, %v983
        %v1016 = vmul.f32 %v944, %v988
        %v1017 = vmul.f32 %v945, %v988
        %v1018 = vmul.f32 %v946, %v993
        %v1019 = vmul.f32 %v947, %v993
        %v1020 = vmul.f32 %v948, %v998
        %v1021 = vmul.f32 %v949, %v998
        %v1022 = vmul.f32 %v950, %v1003
        %v1023 = vmul.f32 %v951, %v1003
        %v1024 = vmul.f32 %v952, %v1008
        %v1025 = vmul.f32 %v953, %v1008
        %1026 = vst [vmem:[%s298] sm:$0xff] %v1010
        %1027 = vst [vmem:[%s298 + $0x8] sm:$0xff] %v1011
        %1028 = vst [vmem:[%s298 + $0x10] sm:$0xff] %v1012
        %1029 = vst [vmem:[%s298 + $0x18] sm:$0xff] %v1013
        %1030 = vst [vmem:[%s298 + $0x20] sm:$0xff] %v1014
        %1031 = vst [vmem:[%s298 + $0x28] sm:$0xff] %v1015
        %1032 = vst [vmem:[%s298 + $0x30] sm:$0xff] %v1016
        %1033 = vst [vmem:[%s298 + $0x38] sm:$0xff] %v1017
        %1034 = vst [vmem:[%s298 + $0x40] sm:$0xff] %v1018
        %1035 = vst [vmem:[%s298 + $0x48] sm:$0xff] %v1019
        %1036 = vst [vmem:[%s298 + $0x50] sm:$0xff] %v1020
        %1037 = vst [vmem:[%s298 + $0x58] sm:$0xff] %v1021
        %1038 = vst [vmem:[%s298 + $0x60] sm:$0xff] %v1022
        %1039 = vst [vmem:[%s298 + $0x68] sm:$0xff] %v1023
        %1040 = vst [vmem:[%s298 + $0x70] sm:$0xff] %v1024
        %1041 = vst [vmem:[%s298 + $0x78] sm:$0xff] %v1025
      $region40: #{_lambda_.3} parent=31 // pred_fallthru
        _
      %s1042 = smul.u32 8, %s20
      %p1043 = scmp.lt.s32.totalorder %s19, 1
      %s1044 = scalar_select %p1043, %s19, 1
      %p1045 = scmp.lt.s32.totalorder %s1042, 15
      %s1046 = scalar_select %p1045, %s1042, 15
      %s1047 = smul.addr %s1046, 2
      %s1048 = smul.addr %s1044, 32
      %s1049 = sadd.s32 %s1047, %s1048
      %s1050 = smul.addr %s1049, 8
      %s1051 = scalar_lea.vmem %s3, %s1050
      // Predicated region
      $region41: #{_lambda_.3} parent=31 // pred_check
        %p1052 = pneg %p137
      $region42: #{_lambda_.3} parent=31 // pred_check_branch
        %1054 = sbr.rel (%p1052) target = $region44
      $region43: #{_lambda_.3} parent=31 // pred_region
        %s1055 = smul.u32 8, %s20
      $region44: #{_lambda_.3} parent=31 // pred_fallthru
        _
    $region32: #{_lambda_.3} parent=5 // pred_fallthru
      _
    %p1056 = scmp.le.s32.totalorder 2, %s9
    // Predicated region
    $region45: #{_lambda_.3} parent=5 // pred_check
      %p1057 = pneg %p1056
    $region46: #{_lambda_.3} parent=5 // pred_check_branch
      %1059 = sbr.rel (%p1057) target = $region48
    $region47: #{_lambda_.3} parent=5 // pred_region
      %s1060 = ssub.s32 %s9, 2
      // Predicated region
      $region49: #{_lambda_.3} parent=47 // pred_check
        %p1061 = pneg %p143
      $region50: #{_lambda_.3} parent=47 // pred_check_branch
        %1063 = sbr.rel (%p1061) target = $region52
      $region51: #{_lambda_.3} parent=47 // pred_region
        %s1064 = smul.u32 8, %s23
        %p1065 = scmp.lt.s32.totalorder %s22, 1
        %s1066 = scalar_select %p1065, %s22, 1
        %p1067 = scmp.lt.s32.totalorder %s1064, 15
        %s1068 = scalar_select %p1067, %s1064, 15
        %s1069 = smul.addr %s1068, 2
        %s1070 = smul.addr %s1066, 32
        %s1071 = sadd.s32 %s1069, %s1070
        %s1072 = smul.addr %s1071, 8
        %s1073 = scalar_lea.vmem %s3, %s1072
      $region52: #{_lambda_.3} parent=47 // pred_fallthru
        _
    $region48: #{_lambda_.3} parent=5 // pred_fallthru
      _
  $region6: #{_lambda_.3} parent=0 // loop_footer
    %s13 = sadd.s32 1, %s9
  $region7: #{_lambda_.3} parent=0 // loop_footer_branch
    %8 = sbr.rel target = $region3
  $region8: #{_lambda_.3} parent=0 // loop_exit
    _

</llo_original>
